<compile_context>
chip_gen: v7x
topology: tpu7x:2x2x1
jax: 0.10.0
libtpu: 0.0.40
codegen_flags: <defaults>
</compile_context>

<pallas_src>
import math
from functools import partial

import jax
import jax.numpy as jnp
from jax.experimental import pallas as pl
from jax.experimental.pallas import tpu as pltpu


def _layernorm(x, gamma, beta, eps=1e-5):
    mean = jnp.mean(x, axis=-1, keepdims=True)
    var = jnp.mean(jnp.square(x - mean), axis=-1, keepdims=True)
    return (x - mean) * jax.lax.rsqrt(var + eps) * gamma + beta


def _forward(q, src, wq, bq, wkv, bkv, wo, w1, b1, w2, vec,
             *, n_head, mxu_dtype, approx_recip):
    """One batch element: q, src are (L, E); all vector math in f32, MXU in mxu_dtype."""
    L, E = src.shape
    Dh = E // n_head
    scale = 1.0 / math.sqrt(Dh)

    bo, b2 = vec[0:1], vec[1:2]
    g1, be1 = vec[2:3], vec[3:4]
    g2, be2 = vec[4:5], vec[5:6]

    # --- input projections: Q matmul + fused K|V matmul (f32 accumulation) ---
    Q = jnp.dot(q.astype(mxu_dtype), wq, preferred_element_type=jnp.float32) + bq
    KV = jnp.dot(src.astype(mxu_dtype), wkv, preferred_element_type=jnp.float32) + bkv
    Qs = (Q * scale).astype(mxu_dtype)
    K = KV[:, :E].astype(mxu_dtype)
    V = KV[:, E:].astype(mxu_dtype)

    # --- multi-head attention: transpose-free scores, accumulate through W_o ---
    nt_dims = (((1,), (1,)), ((), ()))          # contract head_dim on both (A @ B^T, no XLU transpose)
    attn = jnp.zeros((L, E), jnp.float32)
    for h in range(n_head):
        sl = slice(h * Dh, (h + 1) * Dh)
        s = jax.lax.dot_general(Qs[:, sl], K[:, sl], nt_dims,
                                preferred_element_type=jnp.float32)       # (L, L) f32
        s = s - jnp.max(s, axis=-1, keepdims=True)
        p = jnp.exp(s)
        d = jnp.sum(p, axis=-1, keepdims=True)
        if approx_recip:
            p = p * pl.reciprocal(d, approx=True)                         # EUP slot
        else:
            p = p / d                                                     # exact (default)
        oh = jnp.dot(p.astype(mxu_dtype), V[:, sl],
                     preferred_element_type=jnp.float32)                  # (L, Dh)
        attn = attn + jnp.dot(oh.astype(mxu_dtype), wo[sl, :],
                              preferred_element_type=jnp.float32)         # (L, E)
    attn = attn + bo

    # --- residual (from enc_src) + LayerNorm 1 (dropout1 = identity) ---
    x = _layernorm(src + attn, g1, be1)

    # --- feed-forward: w_2(relu(w_1(x))) ---
    h1 = jnp.maximum(
        jnp.dot(x.astype(mxu_dtype), w1, preferred_element_type=jnp.float32) + b1, 0.0)
    ffn = jnp.dot(h1.astype(mxu_dtype), w2, preferred_element_type=jnp.float32) + b2

    # --- residual + LayerNorm 2 (dropout2 = identity) ---
    return _layernorm(x + ffn, g2, be2)


def encoder_layer_kernel(q_ref, src_ref,
                         wq_ref, bq_ref, wkv_ref, bkv_ref, wo_ref,
                         w1_ref, b1_ref, w2_ref, vec_ref,
                         out_ref, *, n_head, mxu_dtype, approx_recip, batch_major):
    if batch_major:
        q, src = q_ref[0], src_ref[0]            # refs are (1, L, E)
    else:
        q, src = q_ref[...], src_ref[...]        # refs are (L, E) (batch dim squeezed)

    y = _forward(q, src,
                 wq_ref[...], bq_ref[...], wkv_ref[...], bkv_ref[...],
                 wo_ref[...], w1_ref[...], b1_ref[...], w2_ref[...], vec_ref[...],
                 n_head=n_head, mxu_dtype=mxu_dtype, approx_recip=approx_recip)

    if batch_major:
        out_ref[0] = y.astype(out_ref.dtype)
    else:
        out_ref[...] = y.astype(out_ref.dtype)


def _vmem_limit_bytes():
    # Generation-aware: ~75% of physical VMEM, capped (v7x: 64 MiB -> 48; v5e/v6e: 128 -> 96).
    try:
        cap = int(pltpu.get_tpu_info().vmem_capacity_bytes)
    except Exception:
        cap = 64 * 1024 * 1024
    return int(min(cap * 3 // 4, 100 * 1024 * 1024))


def encoder_layer(q, enc_src, params, n_head, mxu_dtype=jnp.bfloat16,
                  approx_recip=False, batch_major=False):
    """q, enc_src: (L, N, E) float32 -> (L, N, E) float32."""
    L, N, E = q.shape
    assert E % n_head == 0

    # Pre-transposed / fused / packed parameters (all layout work is host-side).
    wq_t = params["wq"].T.astype(mxu_dtype)                                        # (E, E)
    wkv_t = jnp.concatenate([params["wk"], params["wv"]], 0).T.astype(mxu_dtype)   # (E, 2E)
    wo_t = params["wo"].T.astype(mxu_dtype)                                        # (E, E)
    w1_t = params["w1"].T.astype(mxu_dtype)                                        # (E, Dff)
    w2_t = params["w2"].T.astype(mxu_dtype)                                        # (Dff, E)
    bq = params["bq"]                                                              # (1, E)
    bkv = jnp.concatenate([params["bk"], params["bv"]], -1)                        # (1, 2E)
    b1 = params["b1"]                                                              # (1, Dff)
    vec6 = jnp.concatenate([params["bo"], params["b2"], params["g1"],
                            params["be1"], params["g2"], params["be2"]], 0)        # (6, E)
    weights = [wq_t, bq, wkv_t, bkv, wo_t, w1_t, b1, w2_t, vec6]

    # q only feeds the Q projection -> ship it in the MXU dtype (halves its HBM->VMEM DMA
    # when bf16); enc_src stays f32 for the residual path.
    q_in = q.astype(mxu_dtype)

    if batch_major:
        # Proven fallback layout: one HBM transpose each way, batch-leading blocks.
        q_in = jnp.transpose(q_in, (1, 0, 2))
        src_in = jnp.transpose(enc_src, (1, 0, 2))
        seq_spec = pl.BlockSpec((1, L, E), lambda n: (n, 0, 0))
        out_shape = jax.ShapeDtypeStruct((N, L, E), jnp.float32)
    else:
        # Native (L, N, E) layout: no wrapper transposes; the DMA strides over batch
        # column n and the squeezed dim gives the kernel a clean (L, E) slab.
        src_in = enc_src
        seq_spec = pl.BlockSpec((L, None, E), lambda n: (0, n, 0))
        out_shape = jax.ShapeDtypeStruct((L, N, E), jnp.float32)

    def weight_spec(a):
        return pl.BlockSpec(a.shape, lambda n, nd=a.ndim: (0,) * nd)

    out = pl.pallas_call(
        partial(encoder_layer_kernel, n_head=n_head, mxu_dtype=mxu_dtype,
                approx_recip=approx_recip, batch_major=batch_major),
        out_shape=out_shape,
        grid_spec=pltpu.PrefetchScalarGridSpec(
            num_scalar_prefetch=0,
            grid=(N,),
            in_specs=[seq_spec, seq_spec] + [weight_spec(w) for w in weights],
            out_specs=seq_spec,
        ),
        compiler_params=pltpu.CompilerParams(
            dimension_semantics=("parallel",),
            vmem_limit_bytes=_vmem_limit_bytes(),
        ),
    )(q_in, src_in, *weights)

    if batch_major:
        out = jnp.transpose(out, (1, 0, 2))
    return out


def make_params(key, d_model, n_head, d_forward):
    ks = jax.random.split(key, 8)
    s_in = 1.0 / math.sqrt(d_model)
    s_ff = 1.0 / math.sqrt(d_forward)
    in_proj_w = jax.random.uniform(ks[0], (3 * d_model, d_model), jnp.float32, -s_in, s_in)
    in_proj_b = jax.random.uniform(ks[1], (3 * d_model,), jnp.float32, -s_in, s_in)
    return {
        "wq": in_proj_w[:d_model],
        "wk": in_proj_w[d_model:2 * d_model],
        "wv": in_proj_w[2 * d_model:],
        "bq": in_proj_b[:d_model].reshape(1, d_model),
        "bk": in_proj_b[d_model:2 * d_model].reshape(1, d_model),
        "bv": in_proj_b[2 * d_model:].reshape(1, d_model),
        "wo": jax.random.uniform(ks[2], (d_model, d_model), jnp.float32, -s_in, s_in),
        "bo": jax.random.uniform(ks[3], (1, d_model), jnp.float32, -s_in, s_in),
        "w1": jax.random.uniform(ks[4], (d_forward, d_model), jnp.float32, -s_in, s_in),
        "b1": jax.random.uniform(ks[5], (1, d_forward), jnp.float32, -s_in, s_in),
        "w2": jax.random.uniform(ks[6], (d_model, d_forward), jnp.float32, -s_ff, s_ff),
        "b2": jax.random.uniform(ks[7], (1, d_model), jnp.float32, -s_ff, s_ff),
        "g1": jnp.ones((1, d_model), jnp.float32),
        "be1": jnp.zeros((1, d_model), jnp.float32),
        "g2": jnp.ones((1, d_model), jnp.float32),
        "be2": jnp.zeros((1, d_model), jnp.float32),
    }


def reference(q, enc_src, p, n_head):
    # Plain-JAX reference mirroring torch.nn.MultiheadAttention + EncoderLayer semantics.
    L, N, E = q.shape
    Dh = E // n_head

    def proj(x, w, b):
        return jnp.einsum("lnd,ed->lne", x, w) + b[0]

    Q = proj(q, p["wq"], p["bq"]) / math.sqrt(Dh)
    K = proj(enc_src, p["wk"], p["bk"])
    V = proj(enc_src, p["wv"], p["bv"])
    Qh = Q.reshape(L, N, n_head, Dh)
    Kh = K.reshape(L, N, n_head, Dh)
    Vh = V.reshape(L, N, n_head, Dh)
    s = jnp.einsum("qnhd,knhd->nhqk", Qh, Kh)
    a = jax.nn.softmax(s, axis=-1)
    o = jnp.einsum("nhqk,knhd->qnhd", a, Vh).reshape(L, N, E)
    attn = jnp.einsum("lnd,ed->lne", o, p["wo"]) + p["bo"][0]

    def ln(x, g, b):
        m = x.mean(-1, keepdims=True)
        v = ((x - m) ** 2).mean(-1, keepdims=True)
        return (x - m) / jnp.sqrt(v + 1e-5) * g[0] + b[0]

    x = ln(enc_src + attn, p["g1"], p["be1"])
    h = jnp.maximum(jnp.einsum("lnd,fd->lnf", x, p["w1"]) + p["b1"][0], 0.0)
    f = jnp.einsum("lnf,df->lnd", h, p["w2"]) + p["b2"][0]
    return ln(x + f, p["g2"], p["be2"])


if __name__ == "__main__":
    d_model, n_head, d_forward = 32, 4, 64
    L, N = 8, 2

    key = jax.random.PRNGKey(0)
    kq, ks, kp = jax.random.split(key, 3)
    q = jax.random.normal(kq, (L, N, d_model), jnp.float32)
    enc_src = jax.random.normal(ks, (L, N, d_model), jnp.float32)
    params = make_params(kp, d_model, n_head, d_forward)

    ref = reference(q, enc_src, params, n_head)

    # Prefer the transpose-free native (L, N, E) layout; fall back to the proven
    # batch-major layout if this Pallas build rejects squeezed middle block dims.
    batch_major = False
    try:
        out_f32 = jax.block_until_ready(
            encoder_layer(q, enc_src, params, n_head, mxu_dtype=jnp.float32,
                          batch_major=False))
        if not bool(jnp.allclose(out_f32, ref, atol=1e-3, rtol=1e-3)):
            raise ValueError("native-layout numerics mismatch")
    except Exception:
        batch_major = True
        out_f32 = jax.block_until_ready(
            encoder_layer(q, enc_src, params, n_head, mxu_dtype=jnp.float32,
                          batch_major=True))

    # f32 MXU path + exact softmax divide: tight check.
    assert out_f32.shape == (L, N, d_model)
    assert jnp.allclose(out_f32, ref, atol=1e-3, rtol=1e-3), "f32 mismatch vs reference"

    # bf16 MXU inputs with f32 accumulation + approx EUP reciprocal: loose check.
    out_bf16 = jax.block_until_ready(
        encoder_layer(q, enc_src, params, n_head, mxu_dtype=jnp.bfloat16,
                      approx_recip=True, batch_major=batch_major))
    assert out_bf16.shape == (L, N, d_model)
    assert jnp.allclose(out_bf16, ref, atol=1e-1, rtol=1e-1), "bf16 mismatch vs reference"

    print("KERNEL_OK")
</pallas_src>

<mosaic_0001>
module attributes {stable_mosaic.version = 11 : i64} {
  func.func @encoder_layer_kernel(%arg0: i32, %arg1: memref<1x8x32xf32, #tpu.memory_space<vmem>>, %arg2: memref<1x8x32xf32, #tpu.memory_space<vmem>>, %arg3: memref<32x32xf32, #tpu.memory_space<vmem>>, %arg4: memref<1x32xf32, #tpu.memory_space<vmem>>, %arg5: memref<32x64xf32, #tpu.memory_space<vmem>>, %arg6: memref<1x64xf32, #tpu.memory_space<vmem>>, %arg7: memref<32x32xf32, #tpu.memory_space<vmem>>, %arg8: memref<32x64xf32, #tpu.memory_space<vmem>>, %arg9: memref<1x64xf32, #tpu.memory_space<vmem>>, %arg10: memref<64x32xf32, #tpu.memory_space<vmem>>, %arg11: memref<6x32xf32, #tpu.memory_space<vmem>>, %arg12: memref<1x8x32xf32, #tpu.memory_space<vmem>>) attributes {dimension_semantics = [#tpu.dimension_semantics<parallel>], iteration_bounds = array<i64: 2>, scalar_prefetch = 0 : i64, scratch_operands = 0 : i64, tpu.core_type = #tpu.core_type<tc>, window_params = [{transform_indices = @transform_0, window_bounds = array<i64: 1, 8, 32>}, {transform_indices = @transform_1, window_bounds = array<i64: 1, 8, 32>}, {pipeline_mode = #tpu.pipeline_mode<synchronous>, transform_indices = @transform_2, window_bounds = array<i64: 32, 32>}, {pipeline_mode = #tpu.pipeline_mode<synchronous>, transform_indices = @transform_3, window_bounds = array<i64: 1, 32>}, {pipeline_mode = #tpu.pipeline_mode<synchronous>, transform_indices = @transform_4, window_bounds = array<i64: 32, 64>}, {pipeline_mode = #tpu.pipeline_mode<synchronous>, transform_indices = @transform_5, window_bounds = array<i64: 1, 64>}, {pipeline_mode = #tpu.pipeline_mode<synchronous>, transform_indices = @transform_6, window_bounds = array<i64: 32, 32>}, {pipeline_mode = #tpu.pipeline_mode<synchronous>, transform_indices = @transform_7, window_bounds = array<i64: 32, 64>}, {pipeline_mode = #tpu.pipeline_mode<synchronous>, transform_indices = @transform_8, window_bounds = array<i64: 1, 64>}, {pipeline_mode = #tpu.pipeline_mode<synchronous>, transform_indices = @transform_9, window_bounds = array<i64: 64, 32>}, {pipeline_mode = #tpu.pipeline_mode<synchronous>, transform_indices = @transform_10, window_bounds = array<i64: 6, 32>}, {transform_indices = @transform_11, window_bounds = array<i64: 1, 8, 32>}]} {
    %c0 = arith.constant 0 : index
    %c0_0 = arith.constant 0 : index
    %c0_1 = arith.constant 0 : index
    %0 = vector.load %arg1[%c0, %c0_0, %c0_1] : memref<1x8x32xf32, #tpu.memory_space<vmem>>, vector<1x8x32xf32>
    %1 = vector.shape_cast %0 : vector<1x8x32xf32> to vector<8x32xf32>
    %c0_2 = arith.constant 0 : index
    %c0_3 = arith.constant 0 : index
    %c0_4 = arith.constant 0 : index
    %2 = vector.load %arg2[%c0_2, %c0_3, %c0_4] : memref<1x8x32xf32, #tpu.memory_space<vmem>>, vector<1x8x32xf32>
    %3 = vector.shape_cast %2 : vector<1x8x32xf32> to vector<8x32xf32>
    %c0_5 = arith.constant 0 : index
    %c0_6 = arith.constant 0 : index
    %4 = vector.load %arg3[%c0_5, %c0_6] : memref<32x32xf32, #tpu.memory_space<vmem>>, vector<32x32xf32>
    %c0_7 = arith.constant 0 : index
    %c0_8 = arith.constant 0 : index
    %5 = vector.load %arg4[%c0_7, %c0_8] : memref<1x32xf32, #tpu.memory_space<vmem>>, vector<1x32xf32>
    %c0_9 = arith.constant 0 : index
    %c0_10 = arith.constant 0 : index
    %6 = vector.load %arg5[%c0_9, %c0_10] : memref<32x64xf32, #tpu.memory_space<vmem>>, vector<32x64xf32>
    %c0_11 = arith.constant 0 : index
    %c0_12 = arith.constant 0 : index
    %7 = vector.load %arg6[%c0_11, %c0_12] : memref<1x64xf32, #tpu.memory_space<vmem>>, vector<1x64xf32>
    %c0_13 = arith.constant 0 : index
    %c0_14 = arith.constant 0 : index
    %8 = vector.load %arg7[%c0_13, %c0_14] : memref<32x32xf32, #tpu.memory_space<vmem>>, vector<32x32xf32>
    %c0_15 = arith.constant 0 : index
    %c0_16 = arith.constant 0 : index
    %9 = vector.load %arg8[%c0_15, %c0_16] : memref<32x64xf32, #tpu.memory_space<vmem>>, vector<32x64xf32>
    %c0_17 = arith.constant 0 : index
    %c0_18 = arith.constant 0 : index
    %10 = vector.load %arg9[%c0_17, %c0_18] : memref<1x64xf32, #tpu.memory_space<vmem>>, vector<1x64xf32>
    %c0_19 = arith.constant 0 : index
    %c0_20 = arith.constant 0 : index
    %11 = vector.load %arg10[%c0_19, %c0_20] : memref<64x32xf32, #tpu.memory_space<vmem>>, vector<64x32xf32>
    %c0_21 = arith.constant 0 : index
    %c0_22 = arith.constant 0 : index
    %12 = vector.load %arg11[%c0_21, %c0_22] : memref<6x32xf32, #tpu.memory_space<vmem>>, vector<6x32xf32>
    %13 = vector.extract_strided_slice %12 {offsets = [0, 0], sizes = [1, 32], strides = [1, 1]} : vector<6x32xf32> to vector<1x32xf32>
    %14 = vector.extract_strided_slice %12 {offsets = [1, 0], sizes = [1, 32], strides = [1, 1]} : vector<6x32xf32> to vector<1x32xf32>
    %15 = vector.extract_strided_slice %12 {offsets = [2, 0], sizes = [1, 32], strides = [1, 1]} : vector<6x32xf32> to vector<1x32xf32>
    %16 = vector.extract_strided_slice %12 {offsets = [3, 0], sizes = [1, 32], strides = [1, 1]} : vector<6x32xf32> to vector<1x32xf32>
    %17 = vector.extract_strided_slice %12 {offsets = [4, 0], sizes = [1, 32], strides = [1, 1]} : vector<6x32xf32> to vector<1x32xf32>
    %18 = vector.extract_strided_slice %12 {offsets = [5, 0], sizes = [1, 32], strides = [1, 1]} : vector<6x32xf32> to vector<1x32xf32>
    %cst = arith.constant dense<0.000000e+00> : vector<8x32xf32>
    %19 = tpu.matmul %1, %4, %cst {dimension_numbers = #tpu.dot_dimension_numbers<[1], [0], [0], [1], [0, 0, 1, 1], [], []>} : vector<8x32xf32>, vector<32x32xf32>, vector<8x32xf32> -> vector<8x32xf32>
    %20 = vector.broadcast %5 : vector<1x32xf32> to vector<8x32xf32>
    %21 = arith.addf %19, %20 : vector<8x32xf32>
    %cst_23 = arith.constant dense<0.000000e+00> : vector<8x64xf32>
    %22 = tpu.matmul %3, %6, %cst_23 {dimension_numbers = #tpu.dot_dimension_numbers<[1], [0], [0], [1], [0, 0, 1, 1], [], []>} : vector<8x32xf32>, vector<32x64xf32>, vector<8x64xf32> -> vector<8x64xf32>
    %23 = vector.broadcast %7 : vector<1x64xf32> to vector<8x64xf32>
    %24 = arith.addf %22, %23 : vector<8x64xf32>
    %cst_24 = arith.constant 0.353553385 : f32
    %25 = vector.broadcast %cst_24 : f32 to vector<8x32xf32>
    %26 = arith.mulf %21, %25 : vector<8x32xf32>
    %27 = vector.extract_strided_slice %24 {offsets = [0, 0], sizes = [8, 32], strides = [1, 1]} : vector<8x64xf32> to vector<8x32xf32>
    %28 = vector.extract_strided_slice %24 {offsets = [0, 32], sizes = [8, 32], strides = [1, 1]} : vector<8x64xf32> to vector<8x32xf32>
    %cst_25 = arith.constant 0.000000e+00 : f32
    %29 = vector.broadcast %cst_25 : f32 to vector<8x32xf32>
    %30 = vector.extract_strided_slice %26 {offsets = [0, 0], sizes = [8, 8], strides = [1, 1]} : vector<8x32xf32> to vector<8x8xf32>
    %31 = vector.extract_strided_slice %27 {offsets = [0, 0], sizes = [8, 8], strides = [1, 1]} : vector<8x32xf32> to vector<8x8xf32>
    %cst_26 = arith.constant dense<0.000000e+00> : vector<8x8xf32>
    %32 = tpu.matmul %30, %31, %cst_26 {dimension_numbers = #tpu.dot_dimension_numbers<[1], [1], [0], [0], [0, 0, 1, 0], [], []>} : vector<8x8xf32>, vector<8x8xf32>, vector<8x8xf32> -> vector<8x8xf32>
    %cst_27 = arith.constant dense<0xFF800000> : vector<8xf32>
    %33 = vector.multi_reduction <maximumf>, %32, %cst_27 [1] : vector<8x8xf32> to vector<8xf32>
    %34 = vector.shape_cast %33 : vector<8xf32> to vector<8x1xf32>
    %35 = vector.broadcast %34 : vector<8x1xf32> to vector<8x8xf32>
    %36 = arith.subf %32, %35 : vector<8x8xf32>
    %37 = math.exp %36 : vector<8x8xf32>
    %cst_28 = arith.constant dense<0.000000e+00> : vector<8xf32>
    %38 = vector.multi_reduction <add>, %37, %cst_28 [1] : vector<8x8xf32> to vector<8xf32>
    %39 = vector.shape_cast %38 : vector<8xf32> to vector<8x1xf32>
    %40 = vector.broadcast %39 : vector<8x1xf32> to vector<8x8xf32>
    %41 = arith.divf %37, %40 : vector<8x8xf32>
    %42 = vector.extract_strided_slice %28 {offsets = [0, 0], sizes = [8, 8], strides = [1, 1]} : vector<8x32xf32> to vector<8x8xf32>
    %cst_29 = arith.constant dense<0.000000e+00> : vector<8x8xf32>
    %43 = tpu.matmul %41, %42, %cst_29 {dimension_numbers = #tpu.dot_dimension_numbers<[1], [0], [0], [1], [0, 0, 1, 1], [], []>} : vector<8x8xf32>, vector<8x8xf32>, vector<8x8xf32> -> vector<8x8xf32>
    %44 = vector.extract_strided_slice %8 {offsets = [0, 0], sizes = [8, 32], strides = [1, 1]} : vector<32x32xf32> to vector<8x32xf32>
    %cst_30 = arith.constant dense<0.000000e+00> : vector<8x32xf32>
    %45 = tpu.matmul %43, %44, %cst_30 {dimension_numbers = #tpu.dot_dimension_numbers<[1], [0], [0], [1], [0, 0, 1, 1], [], []>} : vector<8x8xf32>, vector<8x32xf32>, vector<8x32xf32> -> vector<8x32xf32>
    %46 = arith.addf %29, %45 : vector<8x32xf32>
    %47 = vector.extract_strided_slice %26 {offsets = [0, 8], sizes = [8, 8], strides = [1, 1]} : vector<8x32xf32> to vector<8x8xf32>
    %48 = vector.extract_strided_slice %27 {offsets = [0, 8], sizes = [8, 8], strides = [1, 1]} : vector<8x32xf32> to vector<8x8xf32>
    %cst_31 = arith.constant dense<0.000000e+00> : vector<8x8xf32>
    %49 = tpu.matmul %47, %48, %cst_31 {dimension_numbers = #tpu.dot_dimension_numbers<[1], [1], [0], [0], [0, 0, 1, 0], [], []>} : vector<8x8xf32>, vector<8x8xf32>, vector<8x8xf32> -> vector<8x8xf32>
    %cst_32 = arith.constant dense<0xFF800000> : vector<8xf32>
    %50 = vector.multi_reduction <maximumf>, %49, %cst_32 [1] : vector<8x8xf32> to vector<8xf32>
    %51 = vector.shape_cast %50 : vector<8xf32> to vector<8x1xf32>
    %52 = vector.broadcast %51 : vector<8x1xf32> to vector<8x8xf32>
    %53 = arith.subf %49, %52 : vector<8x8xf32>
    %54 = math.exp %53 : vector<8x8xf32>
    %cst_33 = arith.constant dense<0.000000e+00> : vector<8xf32>
    %55 = vector.multi_reduction <add>, %54, %cst_33 [1] : vector<8x8xf32> to vector<8xf32>
    %56 = vector.shape_cast %55 : vector<8xf32> to vector<8x1xf32>
    %57 = vector.broadcast %56 : vector<8x1xf32> to vector<8x8xf32>
    %58 = arith.divf %54, %57 : vector<8x8xf32>
    %59 = vector.extract_strided_slice %28 {offsets = [0, 8], sizes = [8, 8], strides = [1, 1]} : vector<8x32xf32> to vector<8x8xf32>
    %cst_34 = arith.constant dense<0.000000e+00> : vector<8x8xf32>
    %60 = tpu.matmul %58, %59, %cst_34 {dimension_numbers = #tpu.dot_dimension_numbers<[1], [0], [0], [1], [0, 0, 1, 1], [], []>} : vector<8x8xf32>, vector<8x8xf32>, vector<8x8xf32> -> vector<8x8xf32>
    %61 = vector.extract_strided_slice %8 {offsets = [8, 0], sizes = [8, 32], strides = [1, 1]} : vector<32x32xf32> to vector<8x32xf32>
    %cst_35 = arith.constant dense<0.000000e+00> : vector<8x32xf32>
    %62 = tpu.matmul %60, %61, %cst_35 {dimension_numbers = #tpu.dot_dimension_numbers<[1], [0], [0], [1], [0, 0, 1, 1], [], []>} : vector<8x8xf32>, vector<8x32xf32>, vector<8x32xf32> -> vector<8x32xf32>
    %63 = arith.addf %46, %62 : vector<8x32xf32>
    %64 = vector.extract_strided_slice %26 {offsets = [0, 16], sizes = [8, 8], strides = [1, 1]} : vector<8x32xf32> to vector<8x8xf32>
    %65 = vector.extract_strided_slice %27 {offsets = [0, 16], sizes = [8, 8], strides = [1, 1]} : vector<8x32xf32> to vector<8x8xf32>
    %cst_36 = arith.constant dense<0.000000e+00> : vector<8x8xf32>
    %66 = tpu.matmul %64, %65, %cst_36 {dimension_numbers = #tpu.dot_dimension_numbers<[1], [1], [0], [0], [0, 0, 1, 0], [], []>} : vector<8x8xf32>, vector<8x8xf32>, vector<8x8xf32> -> vector<8x8xf32>
    %cst_37 = arith.constant dense<0xFF800000> : vector<8xf32>
    %67 = vector.multi_reduction <maximumf>, %66, %cst_37 [1] : vector<8x8xf32> to vector<8xf32>
    %68 = vector.shape_cast %67 : vector<8xf32> to vector<8x1xf32>
    %69 = vector.broadcast %68 : vector<8x1xf32> to vector<8x8xf32>
    %70 = arith.subf %66, %69 : vector<8x8xf32>
    %71 = math.exp %70 : vector<8x8xf32>
    %cst_38 = arith.constant dense<0.000000e+00> : vector<8xf32>
    %72 = vector.multi_reduction <add>, %71, %cst_38 [1] : vector<8x8xf32> to vector<8xf32>
    %73 = vector.shape_cast %72 : vector<8xf32> to vector<8x1xf32>
    %74 = vector.broadcast %73 : vector<8x1xf32> to vector<8x8xf32>
    %75 = arith.divf %71, %74 : vector<8x8xf32>
    %76 = vector.extract_strided_slice %28 {offsets = [0, 16], sizes = [8, 8], strides = [1, 1]} : vector<8x32xf32> to vector<8x8xf32>
    %cst_39 = arith.constant dense<0.000000e+00> : vector<8x8xf32>
    %77 = tpu.matmul %75, %76, %cst_39 {dimension_numbers = #tpu.dot_dimension_numbers<[1], [0], [0], [1], [0, 0, 1, 1], [], []>} : vector<8x8xf32>, vector<8x8xf32>, vector<8x8xf32> -> vector<8x8xf32>
    %78 = vector.extract_strided_slice %8 {offsets = [16, 0], sizes = [8, 32], strides = [1, 1]} : vector<32x32xf32> to vector<8x32xf32>
    %cst_40 = arith.constant dense<0.000000e+00> : vector<8x32xf32>
    %79 = tpu.matmul %77, %78, %cst_40 {dimension_numbers = #tpu.dot_dimension_numbers<[1], [0], [0], [1], [0, 0, 1, 1], [], []>} : vector<8x8xf32>, vector<8x32xf32>, vector<8x32xf32> -> vector<8x32xf32>
    %80 = arith.addf %63, %79 : vector<8x32xf32>
    %81 = vector.extract_strided_slice %26 {offsets = [0, 24], sizes = [8, 8], strides = [1, 1]} : vector<8x32xf32> to vector<8x8xf32>
    %82 = vector.extract_strided_slice %27 {offsets = [0, 24], sizes = [8, 8], strides = [1, 1]} : vector<8x32xf32> to vector<8x8xf32>
    %cst_41 = arith.constant dense<0.000000e+00> : vector<8x8xf32>
    %83 = tpu.matmul %81, %82, %cst_41 {dimension_numbers = #tpu.dot_dimension_numbers<[1], [1], [0], [0], [0, 0, 1, 0], [], []>} : vector<8x8xf32>, vector<8x8xf32>, vector<8x8xf32> -> vector<8x8xf32>
    %cst_42 = arith.constant dense<0xFF800000> : vector<8xf32>
    %84 = vector.multi_reduction <maximumf>, %83, %cst_42 [1] : vector<8x8xf32> to vector<8xf32>
    %85 = vector.shape_cast %84 : vector<8xf32> to vector<8x1xf32>
    %86 = vector.broadcast %85 : vector<8x1xf32> to vector<8x8xf32>
    %87 = arith.subf %83, %86 : vector<8x8xf32>
    %88 = math.exp %87 : vector<8x8xf32>
    %cst_43 = arith.constant dense<0.000000e+00> : vector<8xf32>
    %89 = vector.multi_reduction <add>, %88, %cst_43 [1] : vector<8x8xf32> to vector<8xf32>
    %90 = vector.shape_cast %89 : vector<8xf32> to vector<8x1xf32>
    %91 = vector.broadcast %90 : vector<8x1xf32> to vector<8x8xf32>
    %92 = arith.divf %88, %91 : vector<8x8xf32>
    %93 = vector.extract_strided_slice %28 {offsets = [0, 24], sizes = [8, 8], strides = [1, 1]} : vector<8x32xf32> to vector<8x8xf32>
    %cst_44 = arith.constant dense<0.000000e+00> : vector<8x8xf32>
    %94 = tpu.matmul %92, %93, %cst_44 {dimension_numbers = #tpu.dot_dimension_numbers<[1], [0], [0], [1], [0, 0, 1, 1], [], []>} : vector<8x8xf32>, vector<8x8xf32>, vector<8x8xf32> -> vector<8x8xf32>
    %95 = vector.extract_strided_slice %8 {offsets = [24, 0], sizes = [8, 32], strides = [1, 1]} : vector<32x32xf32> to vector<8x32xf32>
    %cst_45 = arith.constant dense<0.000000e+00> : vector<8x32xf32>
    %96 = tpu.matmul %94, %95, %cst_45 {dimension_numbers = #tpu.dot_dimension_numbers<[1], [0], [0], [1], [0, 0, 1, 1], [], []>} : vector<8x8xf32>, vector<8x32xf32>, vector<8x32xf32> -> vector<8x32xf32>
    %97 = arith.addf %80, %96 : vector<8x32xf32>
    %98 = vector.broadcast %13 : vector<1x32xf32> to vector<8x32xf32>
    %99 = arith.addf %97, %98 : vector<8x32xf32>
    %100 = arith.addf %3, %99 : vector<8x32xf32>
    %cst_46 = arith.constant dense<0.000000e+00> : vector<8xf32>
    %101 = vector.multi_reduction <add>, %100, %cst_46 [1] : vector<8x32xf32> to vector<8xf32>
    %102 = vector.shape_cast %101 : vector<8xf32> to vector<8x1xf32>
    %cst_47 = arith.constant 3.200000e+01 : f32
    %103 = vector.broadcast %cst_47 : f32 to vector<8x1xf32>
    %104 = arith.divf %102, %103 : vector<8x1xf32>
    %105 = vector.broadcast %104 : vector<8x1xf32> to vector<8x32xf32>
    %106 = arith.subf %100, %105 : vector<8x32xf32>
    %107 = arith.mulf %106, %106 : vector<8x32xf32>
    %cst_48 = arith.constant dense<0.000000e+00> : vector<8xf32>
    %108 = vector.multi_reduction <add>, %107, %cst_48 [1] : vector<8x32xf32> to vector<8xf32>
    %109 = vector.shape_cast %108 : vector<8xf32> to vector<8x1xf32>
    %cst_49 = arith.constant 3.200000e+01 : f32
    %110 = vector.broadcast %cst_49 : f32 to vector<8x1xf32>
    %111 = arith.divf %109, %110 : vector<8x1xf32>
    %112 = vector.broadcast %104 : vector<8x1xf32> to vector<8x32xf32>
    %113 = arith.subf %100, %112 : vector<8x32xf32>
    %cst_50 = arith.constant 9.99999974E-6 : f32
    %114 = vector.broadcast %cst_50 : f32 to vector<8x1xf32>
    %115 = arith.addf %111, %114 : vector<8x1xf32>
    %116 = math.rsqrt %115 : vector<8x1xf32>
    %117 = vector.broadcast %116 : vector<8x1xf32> to vector<8x32xf32>
    %118 = arith.mulf %113, %117 : vector<8x32xf32>
    %119 = vector.broadcast %15 : vector<1x32xf32> to vector<8x32xf32>
    %120 = arith.mulf %118, %119 : vector<8x32xf32>
    %121 = vector.broadcast %16 : vector<1x32xf32> to vector<8x32xf32>
    %122 = arith.addf %120, %121 : vector<8x32xf32>
    %cst_51 = arith.constant dense<0.000000e+00> : vector<8x64xf32>
    %123 = tpu.matmul %122, %9, %cst_51 {dimension_numbers = #tpu.dot_dimension_numbers<[1], [0], [0], [1], [0, 0, 1, 1], [], []>} : vector<8x32xf32>, vector<32x64xf32>, vector<8x64xf32> -> vector<8x64xf32>
    %124 = vector.broadcast %10 : vector<1x64xf32> to vector<8x64xf32>
    %125 = arith.addf %123, %124 : vector<8x64xf32>
    %cst_52 = arith.constant 0.000000e+00 : f32
    %126 = vector.broadcast %cst_52 : f32 to vector<8x64xf32>
    %127 = arith.maximumf %125, %126 : vector<8x64xf32>
    %cst_53 = arith.constant dense<0.000000e+00> : vector<8x32xf32>
    %128 = tpu.matmul %127, %11, %cst_53 {dimension_numbers = #tpu.dot_dimension_numbers<[1], [0], [0], [1], [0, 0, 1, 1], [], []>} : vector<8x64xf32>, vector<64x32xf32>, vector<8x32xf32> -> vector<8x32xf32>
    %129 = vector.broadcast %14 : vector<1x32xf32> to vector<8x32xf32>
    %130 = arith.addf %128, %129 : vector<8x32xf32>
    %131 = arith.addf %122, %130 : vector<8x32xf32>
    %cst_54 = arith.constant dense<0.000000e+00> : vector<8xf32>
    %132 = vector.multi_reduction <add>, %131, %cst_54 [1] : vector<8x32xf32> to vector<8xf32>
    %133 = vector.shape_cast %132 : vector<8xf32> to vector<8x1xf32>
    %cst_55 = arith.constant 3.200000e+01 : f32
    %134 = vector.broadcast %cst_55 : f32 to vector<8x1xf32>
    %135 = arith.divf %133, %134 : vector<8x1xf32>
    %136 = vector.broadcast %135 : vector<8x1xf32> to vector<8x32xf32>
    %137 = arith.subf %131, %136 : vector<8x32xf32>
    %138 = arith.mulf %137, %137 : vector<8x32xf32>
    %cst_56 = arith.constant dense<0.000000e+00> : vector<8xf32>
    %139 = vector.multi_reduction <add>, %138, %cst_56 [1] : vector<8x32xf32> to vector<8xf32>
    %140 = vector.shape_cast %139 : vector<8xf32> to vector<8x1xf32>
    %cst_57 = arith.constant 3.200000e+01 : f32
    %141 = vector.broadcast %cst_57 : f32 to vector<8x1xf32>
    %142 = arith.divf %140, %141 : vector<8x1xf32>
    %143 = vector.broadcast %135 : vector<8x1xf32> to vector<8x32xf32>
    %144 = arith.subf %131, %143 : vector<8x32xf32>
    %cst_58 = arith.constant 9.99999974E-6 : f32
    %145 = vector.broadcast %cst_58 : f32 to vector<8x1xf32>
    %146 = arith.addf %142, %145 : vector<8x1xf32>
    %147 = math.rsqrt %146 : vector<8x1xf32>
    %148 = vector.broadcast %147 : vector<8x1xf32> to vector<8x32xf32>
    %149 = arith.mulf %144, %148 : vector<8x32xf32>
    %150 = vector.broadcast %17 : vector<1x32xf32> to vector<8x32xf32>
    %151 = arith.mulf %149, %150 : vector<8x32xf32>
    %152 = vector.broadcast %18 : vector<1x32xf32> to vector<8x32xf32>
    %153 = arith.addf %151, %152 : vector<8x32xf32>
    %c0_59 = arith.constant 0 : index
    %c0_60 = arith.constant 0 : index
    %c0_61 = arith.constant 0 : index
    %154 = vector.load %arg12[%c0_59, %c0_60, %c0_61] : memref<1x8x32xf32, #tpu.memory_space<vmem>>, vector<1x8x32xf32>
    %155 = vector.shape_cast %154 : vector<1x8x32xf32> to vector<8x32xf32>
    %156 = vector.shape_cast %153 : vector<8x32xf32> to vector<1x8x32xf32>
    tpu.vector_store %arg12[%c0_59, %c0_60, %c0_61], %156 {strides = array<i32>} : memref<1x8x32xf32, #tpu.memory_space<vmem>>, vector<1x8x32xf32>,
    return
  }
  func.func @transform_0(%arg0: i32) -> (i32, i32, i32) {
    %c0_i32 = arith.constant 0 : i32
    %c0_i32_0 = arith.constant 0 : i32
    %c0_i32_1 = arith.constant 0 : i32
    return %arg0, %c0_i32, %c0_i32_0 : i32, i32, i32
  }
  func.func @transform_1(%arg0: i32) -> (i32, i32, i32) {
    %c0_i32 = arith.constant 0 : i32
    %c0_i32_0 = arith.constant 0 : i32
    %c0_i32_1 = arith.constant 0 : i32
    return %arg0, %c0_i32, %c0_i32_0 : i32, i32, i32
  }
  func.func @transform_2(%arg0: i32) -> (i32, i32) {
    %c0_i32 = arith.constant 0 : i32
    %c0_i32_0 = arith.constant 0 : i32
    %c0_i32_1 = arith.constant 0 : i32
    return %c0_i32, %c0_i32_0 : i32, i32
  }
  func.func @transform_3(%arg0: i32) -> (i32, i32) {
    %c0_i32 = arith.constant 0 : i32
    %c0_i32_0 = arith.constant 0 : i32
    %c0_i32_1 = arith.constant 0 : i32
    return %c0_i32, %c0_i32_0 : i32, i32
  }
  func.func @transform_4(%arg0: i32) -> (i32, i32) {
    %c0_i32 = arith.constant 0 : i32
    %c0_i32_0 = arith.constant 0 : i32
    %c0_i32_1 = arith.constant 0 : i32
    return %c0_i32, %c0_i32_0 : i32, i32
  }
  func.func @transform_5(%arg0: i32) -> (i32, i32) {
    %c0_i32 = arith.constant 0 : i32
    %c0_i32_0 = arith.constant 0 : i32
    %c0_i32_1 = arith.constant 0 : i32
    return %c0_i32, %c0_i32_0 : i32, i32
  }
  func.func @transform_6(%arg0: i32) -> (i32, i32) {
    %c0_i32 = arith.constant 0 : i32
    %c0_i32_0 = arith.constant 0 : i32
    %c0_i32_1 = arith.constant 0 : i32
    return %c0_i32, %c0_i32_0 : i32, i32
  }
  func.func @transform_7(%arg0: i32) -> (i32, i32) {
    %c0_i32 = arith.constant 0 : i32
    %c0_i32_0 = arith.constant 0 : i32
    %c0_i32_1 = arith.constant 0 : i32
    return %c0_i32, %c0_i32_0 : i32, i32
  }
  func.func @transform_8(%arg0: i32) -> (i32, i32) {
    %c0_i32 = arith.constant 0 : i32
    %c0_i32_0 = arith.constant 0 : i32
    %c0_i32_1 = arith.constant 0 : i32
    return %c0_i32, %c0_i32_0 : i32, i32
  }
  func.func @transform_9(%arg0: i32) -> (i32, i32) {
    %c0_i32 = arith.constant 0 : i32
    %c0_i32_0 = arith.constant 0 : i32
    %c0_i32_1 = arith.constant 0 : i32
    return %c0_i32, %c0_i32_0 : i32, i32
  }
  func.func @transform_10(%arg0: i32) -> (i32, i32) {
    %c0_i32 = arith.constant 0 : i32
    %c0_i32_0 = arith.constant 0 : i32
    %c0_i32_1 = arith.constant 0 : i32
    return %c0_i32, %c0_i32_0 : i32, i32
  }
  func.func @transform_11(%arg0: i32) -> (i32, i32, i32) {
    %c0_i32 = arith.constant 0 : i32
    %c0_i32_0 = arith.constant 0 : i32
    %c0_i32_1 = arith.constant 0 : i32
    return %arg0, %c0_i32, %c0_i32_0 : i32, i32, i32
  }
}

</mosaic_0001>

<llo_original>
// kernel: tpu_custom_call.1
$region0: #{tpu_custom_call.1}
  #allocation0 [shape = 'u32[]', space=smem, size = 0x4, offset = 0x4, fixed_abs, tag = 'smem constant byte address 0x4 - core index']
  #allocation1 [shape = 'u32[144,128]{1,0:T(1,128)}', space=vmem, size = 0x12000, scoped, tag = 'internal scratch']
  %s0 = inlined_call_operand.hbm [shape: f32[2,8,32], index: 0, kind: input, shape index: {}]
  %s1 = inlined_call_operand.hbm [shape: f32[2,8,32], index: 1, kind: input, shape index: {}]
  %s2 = inlined_call_operand.vmem [shape: f32[32,32], index: 2, kind: input, shape index: {}]
  %s3 = inlined_call_operand.vmem [shape: f32[1,32], index: 3, kind: input, shape index: {}]
  %s4 = inlined_call_operand.vmem [shape: f32[32,64], index: 4, kind: input, shape index: {}]
  %s5 = inlined_call_operand.vmem [shape: f32[1,64], index: 5, kind: input, shape index: {}]
  %s6 = inlined_call_operand.vmem [shape: f32[32,32], index: 6, kind: input, shape index: {}]
  %s7 = inlined_call_operand.hbm [shape: f32[32,64], index: 7, kind: input, shape index: {}]
  %s8 = inlined_call_operand.hbm [shape: f32[1,64], index: 8, kind: input, shape index: {}]
  %s9 = inlined_call_operand.vmem [shape: f32[64,32], index: 9, kind: input, shape index: {}]
  %s10 = inlined_call_operand.hbm [shape: f32[6,32], index: 10, kind: input, shape index: {}]
  %s11 = inlined_call_operand.hbm [shape: f32[2,8,32], index: 11, kind: output, shape index: {}]
  %s12 = sld [smem:[#allocation0]]
  $region97: #{tpu_custom_call.1} parent=0
    _
  %s14 = ssub.s32 1, %s12
  %s15 = scalar_select 0, %s14, %s12
  $region1: #{tpu_custom_call.1} parent=0
    #allocation2 [shape = 'u8[8192]{0}', space=vmem, size = 0x2000, scoped, tag = 'input window, operand 0']
    #allocation3 [shape = 's32[2]{0}', space=sflag, size = 0x8, scoped, tag = 'scoped memory for tpu_custom_call.1']
    #allocation4 [shape = 's32[2]{0}', space=sflag, size = 0x8, scoped, tag = 'scoped memory for tpu_custom_call.1']
    #allocation5 [shape = 'u8[8192]{0}', space=vmem, size = 0x2000, scoped, tag = 'input window, operand 1']
    #allocation6 [shape = 's32[2]{0}', space=sflag, size = 0x8, scoped, tag = 'scoped memory for tpu_custom_call.1']
    #allocation7 [shape = 'u8[16384]{0}', space=vmem, size = 0x4000, scoped, tag = 'input window, operand 7, single buffered']
    #allocation8 [shape = 'u8[512]{0}', space=vmem, size = 0x400, scoped, tag = 'input window, operand 8, single buffered']
    #allocation9 [shape = 's32[1]{0}', space=sflag, size = 0x4, scoped, tag = 'scoped memory for tpu_custom_call.1']
    #allocation10 [shape = 'u8[4096]{0}', space=vmem, size = 0x1000, scoped, tag = 'input window, operand 10, single buffered']
    #allocation11 [shape = 'u8[8192]{0}', space=vmem, size = 0x2000, scoped, tag = 'output window, operand 0']
    %16 = vsyncpa [#allocation3], 0
    %s17 = scalar_lea.sflag [#allocation3], 1
    %18 = vsyncpa %s17, 0
    %19 = vsyncpa [#allocation6], 0
    %s20 = scalar_lea.sflag [#allocation6], 1
    %21 = vsyncpa %s20, 0
    %22 = vsyncpa [#allocation9], 0
    %23 = vsyncpa [#allocation4], 0
    %s24 = scalar_lea.sflag [#allocation4], 1
    %25 = vsyncpa %s24, 0
    loop: start=0, step=1, limit=4
    $region2: #{tpu_custom_call.1} parent=1 // loop_pre_header
      _
    $region3: #{tpu_custom_call.1} parent=1 // loop_header
      %s27 = sphi 0, %s31
      %p28 = scmp.ge.s32.totalorder %s27, 4
      %s37 = sphi 0, %s39
      %s40 = sphi 0, %s37
      %s41 = sphi 0, %s40
      %s57 = sphi 0, %s41
      %s63 = sphi 0, %s65
      %s66 = sphi 0, %s63
      %s67 = sphi 0, %s66
      %s83 = sphi 0, %s67
      %s87 = sphi 0, %s87
      %s89 = sphi 0, %s87
      %s90 = sphi 0, %s89
      %s104 = sphi 0, %s90
      %s108 = sphi 0, %s108
      %s110 = sphi 0, %s108
      %s111 = sphi 0, %s110
      %s125 = sphi 0, %s111
      %s129 = sphi 0, %s129
      %s131 = sphi 0, %s129
      %s132 = sphi 0, %s131
      %s146 = sphi 0, %s132
      %s150 = sphi 0, %s150
      %s152 = sphi 0, %s150
      %s153 = sphi 0, %s152
      %s167 = sphi 0, %s153
      %s171 = sphi 0, %s171
      %s173 = sphi 0, %s171
      %s174 = sphi 0, %s173
      %s188 = sphi 0, %s174
      %s192 = sphi 0, %s192
      %s194 = sphi 0, %s192
      %s195 = sphi 0, %s194
      %s209 = sphi 0, %s195
      %s213 = sphi 0, %s213
      %s215 = sphi 0, %s213
      %s216 = sphi 0, %s215
      %s230 = sphi 0, %s216
      %s234 = sphi 0, %s234
      %s236 = sphi 0, %s234
      %s237 = sphi 0, %s236
      %s251 = sphi 0, %s237
      %s255 = sphi 0, %s255
      %s257 = sphi 0, %s255
      %s258 = sphi 0, %s257
      %s272 = sphi 0, %s258
      %s278 = sphi 0, %s280
      %s281 = sphi 0, %s278
      %s282 = sphi 0, %s281
      %s298 = sphi 0, %s282
    $region4: #{tpu_custom_call.1} parent=1 // loop_header_branch
      %30 = sbr.rel (%p28) target = $region8
    $region5: #{tpu_custom_call.1} parent=1 // loop_body
      %s32 = ssub.s32 %s27, 1
      %s33 = ssub.s32 %s27, 2
      %s34 = sadd.s32 %s27, 1
      %s35 = ssub.s32 %s27, %s34
      %p36 = scmp.eq.s32.totalorder %s35, 0
      %s38 = sadd.s32 %s37, 1
      %s39 = scalar_select %p36, %s37, %s38
      %p42 = pneg %p36
      %p43 = scmp.eq.s32.totalorder %s27, 1
      %p44 = por %p42, %p43
      %p45 = scmp.ne.s32.totalorder %s37, %s40
      %p46 = scmp.eq.s32.totalorder %s27, 0
      %p47 = por %p45, %p46
      %p48 = scmp.ne.s32.totalorder %s37, %s40
      %p49 = scmp.eq.s32.totalorder %s32, 1
      %p50 = por %p48, %p49
      %p51 = scmp.ne.s32.totalorder %s40, %s41
      %p52 = scmp.eq.s32.totalorder %s32, 0
      %p53 = por %p51, %p52
      %p54 = scmp.ne.s32.totalorder %s40, %s41
      %p55 = scmp.eq.s32.totalorder %s33, 1
      %p56 = por %p54, %p55
      %p58 = scmp.ne.s32.totalorder %s41, %s57
      %p59 = scmp.eq.s32.totalorder %s33, 0
      %p60 = por %p58, %p59
      %s61 = ssub.s32 %s27, %s34
      %p62 = scmp.eq.s32.totalorder %s61, 0
      %s64 = sadd.s32 %s63, 1
      %s65 = scalar_select %p62, %s63, %s64
      %p68 = pneg %p62
      %p69 = scmp.eq.s32.totalorder %s27, 1
      %p70 = por %p68, %p69
      %p71 = scmp.ne.s32.totalorder %s63, %s66
      %p72 = scmp.eq.s32.totalorder %s27, 0
      %p73 = por %p71, %p72
      %p74 = scmp.ne.s32.totalorder %s63, %s66
      %p75 = scmp.eq.s32.totalorder %s32, 1
      %p76 = por %p74, %p75
      %p77 = scmp.ne.s32.totalorder %s66, %s67
      %p78 = scmp.eq.s32.totalorder %s32, 0
      %p79 = por %p77, %p78
      %p80 = scmp.ne.s32.totalorder %s66, %s67
      %p81 = scmp.eq.s32.totalorder %s33, 1
      %p82 = por %p80, %p81
      %p84 = scmp.ne.s32.totalorder %s67, %s83
      %p85 = scmp.eq.s32.totalorder %s33, 0
      %p86 = por %p84, %p85
      %s88 = sadd.s32 %s87, 1
      %p91 = scmp.eq.s32.totalorder %s27, 1
      %p92 = scmp.ne.s32.totalorder %s87, %s89
      %p93 = scmp.eq.s32.totalorder %s27, 0
      %p94 = por %p92, %p93
      %p95 = scmp.ne.s32.totalorder %s87, %s89
      %p96 = scmp.eq.s32.totalorder %s32, 1
      %p97 = por %p95, %p96
      %p98 = scmp.ne.s32.totalorder %s89, %s90
      %p99 = scmp.eq.s32.totalorder %s32, 0
      %p100 = por %p98, %p99
      %p101 = scmp.ne.s32.totalorder %s89, %s90
      %p102 = scmp.eq.s32.totalorder %s33, 1
      %p103 = por %p101, %p102
      %p105 = scmp.ne.s32.totalorder %s90, %s104
      %p106 = scmp.eq.s32.totalorder %s33, 0
      %p107 = por %p105, %p106
      %s109 = sadd.s32 %s108, 1
      %p112 = scmp.eq.s32.totalorder %s27, 1
      %p113 = scmp.ne.s32.totalorder %s108, %s110
      %p114 = scmp.eq.s32.totalorder %s27, 0
      %p115 = por %p113, %p114
      %p116 = scmp.ne.s32.totalorder %s108, %s110
      %p117 = scmp.eq.s32.totalorder %s32, 1
      %p118 = por %p116, %p117
      %p119 = scmp.ne.s32.totalorder %s110, %s111
      %p120 = scmp.eq.s32.totalorder %s32, 0
      %p121 = por %p119, %p120
      %p122 = scmp.ne.s32.totalorder %s110, %s111
      %p123 = scmp.eq.s32.totalorder %s33, 1
      %p124 = por %p122, %p123
      %p126 = scmp.ne.s32.totalorder %s111, %s125
      %p127 = scmp.eq.s32.totalorder %s33, 0
      %p128 = por %p126, %p127
      %s130 = sadd.s32 %s129, 1
      %p133 = scmp.eq.s32.totalorder %s27, 1
      %p134 = scmp.ne.s32.totalorder %s129, %s131
      %p135 = scmp.eq.s32.totalorder %s27, 0
      %p136 = por %p134, %p135
      %p137 = scmp.ne.s32.totalorder %s129, %s131
      %p138 = scmp.eq.s32.totalorder %s32, 1
      %p139 = por %p137, %p138
      %p140 = scmp.ne.s32.totalorder %s131, %s132
      %p141 = scmp.eq.s32.totalorder %s32, 0
      %p142 = por %p140, %p141
      %p143 = scmp.ne.s32.totalorder %s131, %s132
      %p144 = scmp.eq.s32.totalorder %s33, 1
      %p145 = por %p143, %p144
      %p147 = scmp.ne.s32.totalorder %s132, %s146
      %p148 = scmp.eq.s32.totalorder %s33, 0
      %p149 = por %p147, %p148
      %s151 = sadd.s32 %s150, 1
      %p154 = scmp.eq.s32.totalorder %s27, 1
      %p155 = scmp.ne.s32.totalorder %s150, %s152
      %p156 = scmp.eq.s32.totalorder %s27, 0
      %p157 = por %p155, %p156
      %p158 = scmp.ne.s32.totalorder %s150, %s152
      %p159 = scmp.eq.s32.totalorder %s32, 1
      %p160 = por %p158, %p159
      %p161 = scmp.ne.s32.totalorder %s152, %s153
      %p162 = scmp.eq.s32.totalorder %s32, 0
      %p163 = por %p161, %p162
      %p164 = scmp.ne.s32.totalorder %s152, %s153
      %p165 = scmp.eq.s32.totalorder %s33, 1
      %p166 = por %p164, %p165
      %p168 = scmp.ne.s32.totalorder %s153, %s167
      %p169 = scmp.eq.s32.totalorder %s33, 0
      %p170 = por %p168, %p169
      %s172 = sadd.s32 %s171, 1
      %p175 = scmp.eq.s32.totalorder %s27, 1
      %p176 = scmp.ne.s32.totalorder %s171, %s173
      %p177 = scmp.eq.s32.totalorder %s27, 0
      %p178 = por %p176, %p177
      %p179 = scmp.ne.s32.totalorder %s171, %s173
      %p180 = scmp.eq.s32.totalorder %s32, 1
      %p181 = por %p179, %p180
      %p182 = scmp.ne.s32.totalorder %s173, %s174
      %p183 = scmp.eq.s32.totalorder %s32, 0
      %p184 = por %p182, %p183
      %p185 = scmp.ne.s32.totalorder %s173, %s174
      %p186 = scmp.eq.s32.totalorder %s33, 1
      %p187 = por %p185, %p186
      %p189 = scmp.ne.s32.totalorder %s174, %s188
      %p190 = scmp.eq.s32.totalorder %s33, 0
      %p191 = por %p189, %p190
      %s193 = sadd.s32 %s192, 1
      %p196 = scmp.eq.s32.totalorder %s27, 1
      %p197 = scmp.ne.s32.totalorder %s192, %s194
      %p198 = scmp.eq.s32.totalorder %s27, 0
      %p199 = por %p197, %p198
      %p200 = scmp.ne.s32.totalorder %s192, %s194
      %p201 = scmp.eq.s32.totalorder %s32, 1
      %p202 = por %p200, %p201
      %p203 = scmp.ne.s32.totalorder %s194, %s195
      %p204 = scmp.eq.s32.totalorder %s32, 0
      %p205 = por %p203, %p204
      %p206 = scmp.ne.s32.totalorder %s194, %s195
      %p207 = scmp.eq.s32.totalorder %s33, 1
      %p208 = por %p206, %p207
      %p210 = scmp.ne.s32.totalorder %s195, %s209
      %p211 = scmp.eq.s32.totalorder %s33, 0
      %p212 = por %p210, %p211
      %s214 = sadd.s32 %s213, 1
      %p217 = scmp.eq.s32.totalorder %s27, 1
      %p218 = scmp.ne.s32.totalorder %s213, %s215
      %p219 = scmp.eq.s32.totalorder %s27, 0
      %p220 = por %p218, %p219
      %p221 = scmp.ne.s32.totalorder %s213, %s215
      %p222 = scmp.eq.s32.totalorder %s32, 1
      %p223 = por %p221, %p222
      %p224 = scmp.ne.s32.totalorder %s215, %s216
      %p225 = scmp.eq.s32.totalorder %s32, 0
      %p226 = por %p224, %p225
      %p227 = scmp.ne.s32.totalorder %s215, %s216
      %p228 = scmp.eq.s32.totalorder %s33, 1
      %p229 = por %p227, %p228
      %p231 = scmp.ne.s32.totalorder %s216, %s230
      %p232 = scmp.eq.s32.totalorder %s33, 0
      %p233 = por %p231, %p232
      %s235 = sadd.s32 %s234, 1
      %p238 = scmp.eq.s32.totalorder %s27, 1
      %p239 = scmp.ne.s32.totalorder %s234, %s236
      %p240 = scmp.eq.s32.totalorder %s27, 0
      %p241 = por %p239, %p240
      %p242 = scmp.ne.s32.totalorder %s234, %s236
      %p243 = scmp.eq.s32.totalorder %s32, 1
      %p244 = por %p242, %p243
      %p245 = scmp.ne.s32.totalorder %s236, %s237
      %p246 = scmp.eq.s32.totalorder %s32, 0
      %p247 = por %p245, %p246
      %p248 = scmp.ne.s32.totalorder %s236, %s237
      %p249 = scmp.eq.s32.totalorder %s33, 1
      %p250 = por %p248, %p249
      %p252 = scmp.ne.s32.totalorder %s237, %s251
      %p253 = scmp.eq.s32.totalorder %s33, 0
      %p254 = por %p252, %p253
      %s256 = sadd.s32 %s255, 1
      %p259 = scmp.eq.s32.totalorder %s27, 1
      %p260 = scmp.ne.s32.totalorder %s255, %s257
      %p261 = scmp.eq.s32.totalorder %s27, 0
      %p262 = por %p260, %p261
      %p263 = scmp.ne.s32.totalorder %s255, %s257
      %p264 = scmp.eq.s32.totalorder %s32, 1
      %p265 = por %p263, %p264
      %p266 = scmp.ne.s32.totalorder %s257, %s258
      %p267 = scmp.eq.s32.totalorder %s32, 0
      %p268 = por %p266, %p267
      %p269 = scmp.ne.s32.totalorder %s257, %s258
      %p270 = scmp.eq.s32.totalorder %s33, 1
      %p271 = por %p269, %p270
      %p273 = scmp.ne.s32.totalorder %s258, %s272
      %p274 = scmp.eq.s32.totalorder %s33, 0
      %p275 = por %p273, %p274
      %s276 = ssub.s32 %s27, %s34
      %p277 = scmp.eq.s32.totalorder %s276, 0
      %s279 = sadd.s32 %s278, 1
      %s280 = scalar_select %p277, %s278, %s279
      %p283 = pneg %p277
      %p284 = scmp.eq.s32.totalorder %s27, 1
      %p285 = por %p283, %p284
      %p286 = scmp.ne.s32.totalorder %s278, %s281
      %p287 = scmp.eq.s32.totalorder %s27, 0
      %p288 = por %p286, %p287
      %p289 = scmp.ne.s32.totalorder %s278, %s281
      %p290 = scmp.eq.s32.totalorder %s32, 1
      %p291 = por %p289, %p290
      %p292 = scmp.ne.s32.totalorder %s281, %s282
      %p293 = scmp.eq.s32.totalorder %s32, 0
      %p294 = por %p292, %p293
      %p295 = scmp.ne.s32.totalorder %s281, %s282
      %p296 = scmp.eq.s32.totalorder %s33, 1
      %p297 = por %p295, %p296
      %p299 = scmp.ne.s32.totalorder %s282, %s298
      %p300 = scmp.eq.s32.totalorder %s33, 0
      %p301 = por %p299, %p300
      %p302 = scmp.le.s32.totalorder 1, %s27
      %p303 = scmp.lt.s32.totalorder %s27, 3
      %p304 = pnand %p302, %p303
      %p305 = pneg %p304
      // Predicated region
      $region9: #{tpu_custom_call.1} parent=5 // pred_check
        _
      $region10: #{tpu_custom_call.1} parent=5 // pred_check_branch
        %307 = sbr.rel (%p304) target = $region12
      $region11: #{tpu_custom_call.1} parent=5 // pred_region
        %s308 = ssub.s32 %s27, 1
        // Predicated region
        $region13: #{tpu_custom_call.1} parent=11 // pred_check
          %p309 = pneg %p100
        $region14: #{tpu_custom_call.1} parent=11 // pred_check_branch
          %311 = sbr.rel (%p309) target = $region16
        $region15: #{tpu_custom_call.1} parent=11 // pred_region
          _
        $region16: #{tpu_custom_call.1} parent=11 // pred_fallthru
          _
        // Predicated region
        $region17: #{tpu_custom_call.1} parent=11 // pred_check
          %p312 = pneg %p121
        $region18: #{tpu_custom_call.1} parent=11 // pred_check_branch
          %314 = sbr.rel (%p312) target = $region20
        $region19: #{tpu_custom_call.1} parent=11 // pred_region
          _
        $region20: #{tpu_custom_call.1} parent=11 // pred_fallthru
          _
        // Predicated region
        $region21: #{tpu_custom_call.1} parent=11 // pred_check
          %p315 = pneg %p142
        $region22: #{tpu_custom_call.1} parent=11 // pred_check_branch
          %317 = sbr.rel (%p315) target = $region24
        $region23: #{tpu_custom_call.1} parent=11 // pred_region
          _
        $region24: #{tpu_custom_call.1} parent=11 // pred_fallthru
          _
        // Predicated region
        $region25: #{tpu_custom_call.1} parent=11 // pred_check
          %p318 = pneg %p163
        $region26: #{tpu_custom_call.1} parent=11 // pred_check_branch
          %320 = sbr.rel (%p318) target = $region28
        $region27: #{tpu_custom_call.1} parent=11 // pred_region
          _
        $region28: #{tpu_custom_call.1} parent=11 // pred_fallthru
          _
        // Predicated region
        $region29: #{tpu_custom_call.1} parent=11 // pred_check
          %p321 = pneg %p184
        $region30: #{tpu_custom_call.1} parent=11 // pred_check_branch
          %323 = sbr.rel (%p321) target = $region32
        $region31: #{tpu_custom_call.1} parent=11 // pred_region
          _
        $region32: #{tpu_custom_call.1} parent=11 // pred_fallthru
          _
        // Predicated region
        $region33: #{tpu_custom_call.1} parent=11 // pred_check
          %p324 = pneg %p205
        $region34: #{tpu_custom_call.1} parent=11 // pred_check_branch
          %326 = sbr.rel (%p324) target = $region36
        $region35: #{tpu_custom_call.1} parent=11 // pred_region
          %s328 = ssub.s32 512, 512
          %329 = vsyncadd [#allocation6], %s328
          %s330 = sshll.u32 [#allocation7], 4
          %s331 = int_to_ptr.vmem [resolvable:$true] %s330
          %336 = dma.hbm_to_vmem [thread:$0]  %s7, 512, %s331, [#allocation6], 128, 128, 8
        $region36: #{tpu_custom_call.1} parent=11 // pred_fallthru
          _
        // Predicated region
        $region37: #{tpu_custom_call.1} parent=11 // pred_check
          %p337 = pneg %p226
        $region38: #{tpu_custom_call.1} parent=11 // pred_check_branch
          %339 = sbr.rel (%p337) target = $region40
        $region39: #{tpu_custom_call.1} parent=11 // pred_region
          %s341 = ssub.s32 16, 16
          %342 = vsyncadd [#allocation9], %s341
          %s344 = sshll.u32 [#allocation8], 4
          %s345 = int_to_ptr.vmem [resolvable:$true] %s344
          %347 = dma.hbm_to_vmem [thread:$0]  %s8, 16, %s345, [#allocation9]
        $region40: #{tpu_custom_call.1} parent=11 // pred_fallthru
          _
        // Predicated region
        $region41: #{tpu_custom_call.1} parent=11 // pred_check
          %p348 = pneg %p247
        $region42: #{tpu_custom_call.1} parent=11 // pred_check_branch
          %350 = sbr.rel (%p348) target = $region44
        $region43: #{tpu_custom_call.1} parent=11 // pred_region
          _
        $region44: #{tpu_custom_call.1} parent=11 // pred_fallthru
          _
        // Predicated region
        $region45: #{tpu_custom_call.1} parent=11 // pred_check
          %p351 = pneg %p268
        $region46: #{tpu_custom_call.1} parent=11 // pred_check_branch
          %353 = sbr.rel (%p351) target = $region48
        $region47: #{tpu_custom_call.1} parent=11 // pred_region
          %s355 = ssub.s32 128, 128
          %356 = vsyncadd [#allocation9], %s355
          %s358 = sshll.u32 [#allocation10], 4
          %s359 = int_to_ptr.vmem [resolvable:$true] %s358
          %361 = dma.hbm_to_vmem [thread:$0]  %s10, 128, %s359, [#allocation9]
        $region48: #{tpu_custom_call.1} parent=11 // pred_fallthru
          _
      $region12: #{tpu_custom_call.1} parent=5 // pred_fallthru
        _
      %p362 = scmp.lt.s32.totalorder %s27, 2
      // Predicated region
      $region49: #{tpu_custom_call.1} parent=5 // pred_check
        %p363 = pneg %p362
      $region50: #{tpu_custom_call.1} parent=5 // pred_check_branch
        %365 = sbr.rel (%p363) target = $region52
      $region51: #{tpu_custom_call.1} parent=5 // pred_region
        // Predicated region
        $region53: #{tpu_custom_call.1} parent=51 // pred_check
          %p366 = pneg %p47
        $region54: #{tpu_custom_call.1} parent=51 // pred_check_branch
          %368 = sbr.rel (%p366) target = $region56
        $region55: #{tpu_custom_call.1} parent=51 // pred_region
          %s369 = sand.u32 %s37, 1
          %s370 = scalar_lea.sflag [#allocation3], %s369
          %s371 = sand.u32 %s37, 1
          %s372 = smul.addr %s371, 8
          %s373 = scalar_lea.vmem [#allocation2], %s372
          %s375 = ssub.s32 128, 128
          %376 = vsyncadd %s370, %s375
          %s377 = smul.addr %s27, 128
          %s378 = scalar_lea.hbm %s0, %s377
          %s380 = sshll.u32 %s373, 4
          %s381 = int_to_ptr.vmem [resolvable:$true] %s380
          %383 = dma.hbm_to_vmem [thread:$0]  %s378, 128, %s381, %s370
        $region56: #{tpu_custom_call.1} parent=51 // pred_fallthru
          _
        // Predicated region
        $region57: #{tpu_custom_call.1} parent=51 // pred_check
          %p384 = pneg %p73
        $region58: #{tpu_custom_call.1} parent=51 // pred_check_branch
          %386 = sbr.rel (%p384) target = $region60
        $region59: #{tpu_custom_call.1} parent=51 // pred_region
          %s387 = sand.u32 %s27, 1
          %s388 = scalar_lea.sflag [#allocation6], %s387
          %s389 = sand.u32 %s63, 1
          %s390 = smul.addr %s389, 8
          %s391 = scalar_lea.vmem [#allocation5], %s390
          %s393 = ssub.s32 128, 128
          %394 = vsyncadd %s388, %s393
          %s395 = smul.addr %s27, 128
          %s396 = scalar_lea.hbm %s1, %s395
          %s398 = sshll.u32 %s391, 4
          %s399 = int_to_ptr.vmem [resolvable:$true] %s398
          %401 = dma.hbm_to_vmem [thread:$0]  %s396, 128, %s399, %s388
        $region60: #{tpu_custom_call.1} parent=51 // pred_fallthru
          _
      $region52: #{tpu_custom_call.1} parent=5 // pred_fallthru
        _
      %p402 = scmp.le.s32.totalorder 1, %s27
      %p403 = scmp.lt.s32.totalorder %s27, 3
      %p404 = pnand %p402, %p403
      %p405 = pneg %p404
      // Predicated region
      $region61: #{tpu_custom_call.1} parent=5 // pred_check
        _
      $region62: #{tpu_custom_call.1} parent=5 // pred_check_branch
        %407 = sbr.rel (%p404) target = $region64
      $region63: #{tpu_custom_call.1} parent=5 // pred_region
        %s408 = ssub.s32 %s27, 1
        %s409 = sand.u32 %s40, 1
        %s410 = scalar_lea.sflag [#allocation3], %s409
        %s411 = sand.u32 %s40, 1
        %s412 = smul.addr %s411, 8
        %s413 = scalar_lea.vmem [#allocation2], %s412
        // Predicated region
        $region65: #{tpu_custom_call.1} parent=63 // pred_check
          %p414 = pneg %p53
        $region66: #{tpu_custom_call.1} parent=63 // pred_check_branch
          %416 = sbr.rel (%p414) target = $region68
        $region67: #{tpu_custom_call.1} parent=63 // pred_region
          %417 = dma.done %s410, 128
        $region68: #{tpu_custom_call.1} parent=63 // pred_fallthru
          _
        %s418 = sand.u32 %s32, 1
        %s419 = scalar_lea.sflag [#allocation6], %s418
        %s420 = sand.u32 %s66, 1
        %s421 = smul.addr %s420, 8
        %s422 = scalar_lea.vmem [#allocation5], %s421
        // Predicated region
        $region69: #{tpu_custom_call.1} parent=63 // pred_check
          %p423 = pneg %p79
        $region70: #{tpu_custom_call.1} parent=63 // pred_check_branch
          %425 = sbr.rel (%p423) target = $region72
        $region71: #{tpu_custom_call.1} parent=63 // pred_region
          %426 = dma.done %s419, 128
        $region72: #{tpu_custom_call.1} parent=63 // pred_fallthru
          _
        // Predicated region
        $region73: #{tpu_custom_call.1} parent=63 // pred_check
          %p427 = pneg %p205
        $region74: #{tpu_custom_call.1} parent=63 // pred_check_branch
          %429 = sbr.rel (%p427) target = $region76
        $region75: #{tpu_custom_call.1} parent=63 // pred_region
          %430 = dma.done [#allocation6], 512
        $region76: #{tpu_custom_call.1} parent=63 // pred_fallthru
          _
        // Predicated region
        $region77: #{tpu_custom_call.1} parent=63 // pred_check
          %p431 = pneg %p226
        $region78: #{tpu_custom_call.1} parent=63 // pred_check_branch
          %433 = sbr.rel (%p431) target = $region80
        $region79: #{tpu_custom_call.1} parent=63 // pred_region
          %434 = dma.done [#allocation9], 16
        $region80: #{tpu_custom_call.1} parent=63 // pred_fallthru
          _
        // Predicated region
        $region81: #{tpu_custom_call.1} parent=63 // pred_check
          %p435 = pneg %p268
        $region82: #{tpu_custom_call.1} parent=63 // pred_check_branch
          %437 = sbr.rel (%p435) target = $region84
        $region83: #{tpu_custom_call.1} parent=63 // pred_region
          %438 = dma.done [#allocation9], 128
        $region84: #{tpu_custom_call.1} parent=63 // pred_fallthru
          _
        %s439 = sand.u32 %s40, 1
        %s440 = scalar_lea.sflag [#allocation3], %s439
        %s441 = sand.u32 %s40, 1
        %s442 = smul.addr %s441, 8
        %s443 = scalar_lea.vmem [#allocation2], %s442
        %p444 = pneg %p53
        %p445 = pneg %p50
        %s446 = sand.u32 %s32, 1
        %s447 = scalar_lea.sflag [#allocation6], %s446
        %s448 = sand.u32 %s66, 1
        %s449 = smul.addr %s448, 8
        %s450 = scalar_lea.vmem [#allocation5], %s449
        %p451 = pneg %p79
        %p452 = pneg %p76
        %p453 = pneg %p100
        %p454 = pneg %p97
        %p455 = pneg %p121
        %p456 = pneg %p118
        %p457 = pneg %p142
        %p458 = pneg %p139
        %p459 = pneg %p163
        %p460 = pneg %p160
        %p461 = pneg %p184
        %p462 = pneg %p181
        %p463 = pneg %p205
        %p464 = pneg %p202
        %p465 = pneg %p226
        %p466 = pneg %p223
        %p467 = pneg %p247
        %p468 = pneg %p244
        %p469 = pneg %p268
        %p470 = pneg %p265
        %p471 = pneg %p294
        %p472 = pneg %p291
        %s473 = sand.u32 %s281, 1
        %s474 = scalar_lea.sflag [#allocation4], %s473
        %s475 = sand.u32 %s281, 1
        %s476 = smul.addr %s475, 8
        %s477 = scalar_lea.vmem [#allocation11], %s476
        %v478 = vld [vmem:[%s413] sm:$0xff]
        %v479 = vld [vmem:[%s422] sm:$0xff]
        %v480 = vld [vmem:[%s2] sm:$0xff]
        %v481 = vld [vmem:[%s2 + $0x8] sm:$0xff]
        %v482 = vld [vmem:[%s2 + $0x10] sm:$0xff]
        %v483 = vld [vmem:[%s2 + $0x18] sm:$0xff]
        %v484 = vld [vmem:[%s3] sm:$0x1]
        %v485 = vld [vmem:[%s4] sm:$0xff]
        %v486 = vld [vmem:[%s4 + $0x8] sm:$0xff]
        %v487 = vld [vmem:[%s4 + $0x10] sm:$0xff]
        %v488 = vld [vmem:[%s4 + $0x18] sm:$0xff]
        %v489 = vld [vmem:[%s5] sm:$0x1]
        %v490 = vld [vmem:[%s6] sm:$0xff]
        %v491 = vld [vmem:[%s6 + $0x8] sm:$0xff]
        %v492 = vld [vmem:[%s6 + $0x10] sm:$0xff]
        %v493 = vld [vmem:[%s6 + $0x18] sm:$0xff]
        %v494 = vld [vmem:[#allocation7] sm:$0xff]
        %v495 = vld [vmem:[#allocation7 + $0x8] sm:$0xff]
        %v496 = vld [vmem:[#allocation7 + $0x10] sm:$0xff]
        %v497 = vld [vmem:[#allocation7 + $0x18] sm:$0xff]
        %v498 = vld [vmem:[#allocation8] sm:$0x1]
        %v499 = vld [vmem:[%s9] sm:$0xff]
        %v500 = vld [vmem:[%s9 + $0x8] sm:$0xff]
        %v501 = vld [vmem:[%s9 + $0x10] sm:$0xff]
        %v502 = vld [vmem:[%s9 + $0x18] sm:$0xff]
        %v503 = vld [vmem:[%s9 + $0x20] sm:$0xff]
        %v504 = vld [vmem:[%s9 + $0x28] sm:$0xff]
        %v505 = vld [vmem:[%s9 + $0x30] sm:$0xff]
        %v506 = vld [vmem:[%s9 + $0x38] sm:$0xff]
        %v507 = vld [vmem:[#allocation10] sm:$0x3f]
        %v509 = vlaneseq
        %v510 = vshrl.u32 %v509, 7
        %v511 = vsub.s32 0, %v510
        %v512 = vrot.slane %v484, %v511
        %vm514 = vcmask 261120
        %v516 = vsel %vm514, %v478, 0
        %518 = vmatprep.subr.mxu0 0.0
        %519 = vmatpush1.msra.mxu0 %v480
        %520 = vmatprep.subr.mxu0 0.0
        %521 = vmatpush1.msra.mxu0 %v481
        %522 = vmatprep.subr.mxu0 0.0
        %523 = vmatpush1.msra.mxu0 %v482
        %524 = vmatprep.subr.mxu0 0.0
        %525 = vmatpush1.msra.mxu0 %v483
        %526 = vmatprep.subr.mxu0 0.0
        %527 = vmatpush1.msra.mxu0 0.0
        %528 = vmatprep.subr.mxu0 0.0
        %529 = vmatpush1.msra.mxu0 0.0
        %530 = vmatprep.subr.mxu0 0.0
        %531 = vmatpush1.msra.mxu0 0.0
        %532 = vmatprep.subr.mxu0 0.0
        %533 = vmatpush1.msra.mxu0 0.0
        %534 = vmatprep.subr.mxu0 0.0
        %535 = vmatpush1.msra.mxu0 0.0
        %536 = vmatprep.subr.mxu0 0.0
        %537 = vmatpush1.msra.mxu0 0.0
        %538 = vmatprep.subr.mxu0 0.0
        %539 = vmatpush1.msra.mxu0 0.0
        %540 = vmatprep.subr.mxu0 0.0
        %541 = vmatpush1.msra.mxu0 0.0
        %542 = vmatprep.subr.mxu0 0.0
        %543 = vmatpush1.msra.mxu0 0.0
        %544 = vmatprep.subr.mxu0 0.0
        %545 = vmatpush1.msra.mxu0 0.0
        %546 = vmatprep.subr.mxu0 0.0
        %547 = vmatpush1.msra.mxu0 0.0
        %548 = vmatprep.subr.mxu0 0.0
        %549 = vmatpush1.msra.mxu0 0.0
        %550 = vmatprep.subr.mxu0 0.0
        %551 = vmatpush1.msra.mxu0 0.0
        %552 = vmatprep.subr.mxu0 0.0
        %553 = vmatpush1.msra.mxu0 0.0
        %554 = vmatprep.subr.mxu0 0.0
        %555 = vmatpush1.msra.mxu0 0.0
        %556 = vmatprep.subr.mxu0 0.0
        %557 = vmatpush1.msra.mxu0 0.0
        %558 = vmatprep.subr.mxu0 0.0
        %559 = vmatpush1.msra.mxu0 0.0
        %560 = vmatprep.subr.mxu0 0.0
        %561 = vmatpush1.msra.mxu0 0.0
        %562 = vmatprep.subr.mxu0 0.0
        %563 = vmatpush1.msra.mxu0 0.0
        %564 = vmatprep.subr.mxu0 0.0
        %565 = vmatpush1.msra.mxu0 0.0
        %566 = vmatprep.subr.mxu0 0.0
        %567 = vmatpush1.msra.mxu0 0.0
        %568 = vmatprep.subr.mxu0 0.0
        %569 = vmatpush1.msra.mxu0 0.0
        %570 = vmatprep.subr.mxu0 0.0
        %571 = vmatpush1.msra.mxu0 0.0
        %572 = vmatprep.subr.mxu0 0.0
        %573 = vmatpush1.msra.mxu0 0.0
        %574 = vmatprep.subr.mxu0 0.0
        %575 = vmatpush1.msra.mxu0 0.0
        %576 = vmatprep.subr.mxu0 0.0
        %577 = vmatpush1.msra.mxu0 0.0
        %578 = vmatprep.subr.mxu0 0.0
        %579 = vmatpush1.msra.mxu0 0.0
        %580 = vmatprep.subr.mxu0 0.0
        %581 = vmatpush1.msra.mxu0 0.0
        %582 = vmatprep.mubr.f32.mxu0 0.0
        %583 = vmatmul.mubr.f32.gmra.mrb[0].mxu0 %v516
        %v584 = vpop.f32.mrb[0].mxu0
        %v585 = vadd.f32 %v512, %v584
        %v586 = vpop.f32.mrb[0].mxu0
        %587 = vdwg.mxu0
        %v589 = vlaneseq
        %v590 = vshrl.u32 %v589, 7
        %v591 = vsub.s32 0, %v590
        %v592 = vrot.slane %v489, %v591
        %v595 = vsel %vm514, %v479, 0
        %597 = vmatprep.subr.mxu0 0.0
        %598 = vmatpush1.msra.mxu0 %v485
        %599 = vmatprep.subr.mxu0 0.0
        %600 = vmatpush1.msra.mxu0 %v486
        %601 = vmatprep.subr.mxu0 0.0
        %602 = vmatpush1.msra.mxu0 %v487
        %603 = vmatprep.subr.mxu0 0.0
        %604 = vmatpush1.msra.mxu0 %v488
        %605 = vmatprep.subr.mxu0 0.0
        %606 = vmatpush1.msra.mxu0 0.0
        %607 = vmatprep.subr.mxu0 0.0
        %608 = vmatpush1.msra.mxu0 0.0
        %609 = vmatprep.subr.mxu0 0.0
        %610 = vmatpush1.msra.mxu0 0.0
        %611 = vmatprep.subr.mxu0 0.0
        %612 = vmatpush1.msra.mxu0 0.0
        %613 = vmatprep.subr.mxu0 0.0
        %614 = vmatpush1.msra.mxu0 0.0
        %615 = vmatprep.subr.mxu0 0.0
        %616 = vmatpush1.msra.mxu0 0.0
        %617 = vmatprep.subr.mxu0 0.0
        %618 = vmatpush1.msra.mxu0 0.0
        %619 = vmatprep.subr.mxu0 0.0
        %620 = vmatpush1.msra.mxu0 0.0
        %621 = vmatprep.subr.mxu0 0.0
        %622 = vmatpush1.msra.mxu0 0.0
        %623 = vmatprep.subr.mxu0 0.0
        %624 = vmatpush1.msra.mxu0 0.0
        %625 = vmatprep.subr.mxu0 0.0
        %626 = vmatpush1.msra.mxu0 0.0
        %627 = vmatprep.subr.mxu0 0.0
        %628 = vmatpush1.msra.mxu0 0.0
        %629 = vmatprep.subr.mxu0 0.0
        %630 = vmatpush1.msra.mxu0 0.0
        %631 = vmatprep.subr.mxu0 0.0
        %632 = vmatpush1.msra.mxu0 0.0
        %633 = vmatprep.subr.mxu0 0.0
        %634 = vmatpush1.msra.mxu0 0.0
        %635 = vmatprep.subr.mxu0 0.0
        %636 = vmatpush1.msra.mxu0 0.0
        %637 = vmatprep.subr.mxu0 0.0
        %638 = vmatpush1.msra.mxu0 0.0
        %639 = vmatprep.subr.mxu0 0.0
        %640 = vmatpush1.msra.mxu0 0.0
        %641 = vmatprep.subr.mxu0 0.0
        %642 = vmatpush1.msra.mxu0 0.0
        %643 = vmatprep.subr.mxu0 0.0
        %644 = vmatpush1.msra.mxu0 0.0
        %645 = vmatprep.subr.mxu0 0.0
        %646 = vmatpush1.msra.mxu0 0.0
        %647 = vmatprep.subr.mxu0 0.0
        %648 = vmatpush1.msra.mxu0 0.0
        %649 = vmatprep.subr.mxu0 0.0
        %650 = vmatpush1.msra.mxu0 0.0
        %651 = vmatprep.subr.mxu0 0.0
        %652 = vmatpush1.msra.mxu0 0.0
        %653 = vmatprep.subr.mxu0 0.0
        %654 = vmatpush1.msra.mxu0 0.0
        %655 = vmatprep.subr.mxu0 0.0
        %656 = vmatpush1.msra.mxu0 0.0
        %657 = vmatprep.subr.mxu0 0.0
        %658 = vmatpush1.msra.mxu0 0.0
        %659 = vmatprep.subr.mxu0 0.0
        %660 = vmatpush1.msra.mxu0 0.0
        %661 = vmatprep.mubr.f32.mxu0 0.0
        %662 = vmatmul.mubr.f32.gmra.mrb[0].mxu0 %v595
        %v663 = vpop.f32.mrb[0].mxu0
        %v664 = vadd.f32 %v592, %v663
        %v665 = vpop.f32.mrb[0].mxu0
        %666 = vdwg.mxu0
        %v667 = vmul.f32 %v585, 0.35355338
        %vm668 = vcmask 64512
        %v670 = vsel %vm668, %v667, 0
        %v673 = vsel %vm668, %v664, 0
        %675 = vmatprep.subr.mxu0 0.0
        %676 = vmatpush1.xpose.msra.mxu0 %v673
        %677 = vmatprep.subr.mxu0 0.0
        %678 = vmatpush1.xpose.msra.mxu0 0.0
        %679 = vmatprep.subr.mxu0 0.0
        %680 = vmatpush1.xpose.msra.mxu0 0.0
        %681 = vmatprep.subr.mxu0 0.0
        %682 = vmatpush1.xpose.msra.mxu0 0.0
        %683 = vmatprep.subr.mxu0 0.0
        %684 = vmatpush1.xpose.msra.mxu0 0.0
        %685 = vmatprep.subr.mxu0 0.0
        %686 = vmatpush1.xpose.msra.mxu0 0.0
        %687 = vmatprep.subr.mxu0 0.0
        %688 = vmatpush1.xpose.msra.mxu0 0.0
        %689 = vmatprep.subr.mxu0 0.0
        %690 = vmatpush1.xpose.msra.mxu0 0.0
        %691 = vmatprep.subr.mxu0 0.0
        %692 = vmatpush1.xpose.msra.mxu0 0.0
        %693 = vmatprep.subr.mxu0 0.0
        %694 = vmatpush1.xpose.msra.mxu0 0.0
        %695 = vmatprep.subr.mxu0 0.0
        %696 = vmatpush1.xpose.msra.mxu0 0.0
        %697 = vmatprep.subr.mxu0 0.0
        %698 = vmatpush1.xpose.msra.mxu0 0.0
        %699 = vmatprep.subr.mxu0 0.0
        %700 = vmatpush1.xpose.msra.mxu0 0.0
        %701 = vmatprep.subr.mxu0 0.0
        %702 = vmatpush1.xpose.msra.mxu0 0.0
        %703 = vmatprep.subr.mxu0 0.0
        %704 = vmatpush1.xpose.msra.mxu0 0.0
        %705 = vmatprep.subr.mxu0 0.0
        %706 = vmatpush1.xpose.msra.mxu0 0.0
        %707 = vmatprep.subr.mxu0 0.0
        %708 = vmatpush1.xpose.msra.mxu0 0.0
        %709 = vmatprep.subr.mxu0 0.0
        %710 = vmatpush1.xpose.msra.mxu0 0.0
        %711 = vmatprep.subr.mxu0 0.0
        %712 = vmatpush1.xpose.msra.mxu0 0.0
        %713 = vmatprep.subr.mxu0 0.0
        %714 = vmatpush1.xpose.msra.mxu0 0.0
        %715 = vmatprep.subr.mxu0 0.0
        %716 = vmatpush1.xpose.msra.mxu0 0.0
        %717 = vmatprep.subr.mxu0 0.0
        %718 = vmatpush1.xpose.msra.mxu0 0.0
        %719 = vmatprep.subr.mxu0 0.0
        %720 = vmatpush1.xpose.msra.mxu0 0.0
        %721 = vmatprep.subr.mxu0 0.0
        %722 = vmatpush1.xpose.msra.mxu0 0.0
        %723 = vmatprep.subr.mxu0 0.0
        %724 = vmatpush1.xpose.msra.mxu0 0.0
        %725 = vmatprep.subr.mxu0 0.0
        %726 = vmatpush1.xpose.msra.mxu0 0.0
        %727 = vmatprep.subr.mxu0 0.0
        %728 = vmatpush1.xpose.msra.mxu0 0.0
        %729 = vmatprep.subr.mxu0 0.0
        %730 = vmatpush1.xpose.msra.mxu0 0.0
        %731 = vmatprep.subr.mxu0 0.0
        %732 = vmatpush1.xpose.msra.mxu0 0.0
        %733 = vmatprep.subr.mxu0 0.0
        %734 = vmatpush1.xpose.msra.mxu0 0.0
        %735 = vmatprep.subr.mxu0 0.0
        %736 = vmatpush1.xpose.msra.mxu0 0.0
        %737 = vmatprep.subr.mxu0 0.0
        %738 = vmatpush1.xpose.msra.mxu0 0.0
        %739 = vmatprep.mubr.f32.mxu0 0.0
        %740 = vmatmul.mubr.f32.gmra.mrb[0].mxu0 %v670
        %v741 = vpop.f32.mrb[0].mxu0
        %v742 = vadd.f32 0.0, %v741
        %v743 = vpop.f32.mrb[0].mxu0
        %744 = vdwg.mxu0
        %v745 = vsel %vm668, %v742, -inf
        %746 = vmax.xlane.f32.xlu0 %v745
        %v747 = vpop.xlane.xlu0 %746
        %v748 = vsub.f32 %v742, %v747
        %v749 = vmul.f32 %v748, 1.442695
        %v750 = vpow.pop %v749
        %v751 = vsel %vm668, %v750, 0.0
        %752 = vadd.xlane.f32.xlu0 %v751
        %v753 = vpop.xlane.xlu0 %752
        %v754 = vrcp.pop %v753
        %v755 = vmul.f32 %v750, %v754
        %756 = vrot.lane.b32.xlu0 %v664, 96
        %v757 = vpop.permute.xlu0 %756
        %v760 = vsel %vm668, %v755, 0
        %762 = vmatprep.subr.mxu0 0.0
        %763 = vmatpush1.msra.mxu0 %v757
        %764 = vmatprep.subr.mxu0 0.0
        %765 = vmatpush1.msra.mxu0 0.0
        %766 = vmatprep.subr.mxu0 0.0
        %767 = vmatpush1.msra.mxu0 0.0
        %768 = vmatprep.subr.mxu0 0.0
        %769 = vmatpush1.msra.mxu0 0.0
        %770 = vmatprep.subr.mxu0 0.0
        %771 = vmatpush1.msra.mxu0 0.0
        %772 = vmatprep.subr.mxu0 0.0
        %773 = vmatpush1.msra.mxu0 0.0
        %774 = vmatprep.subr.mxu0 0.0
        %775 = vmatpush1.msra.mxu0 0.0
        %776 = vmatprep.subr.mxu0 0.0
        %777 = vmatpush1.msra.mxu0 0.0
        %778 = vmatprep.subr.mxu0 0.0
        %779 = vmatpush1.msra.mxu0 0.0
        %780 = vmatprep.subr.mxu0 0.0
        %781 = vmatpush1.msra.mxu0 0.0
        %782 = vmatprep.subr.mxu0 0.0
        %783 = vmatpush1.msra.mxu0 0.0
        %784 = vmatprep.subr.mxu0 0.0
        %785 = vmatpush1.msra.mxu0 0.0
        %786 = vmatprep.subr.mxu0 0.0
        %787 = vmatpush1.msra.mxu0 0.0
        %788 = vmatprep.subr.mxu0 0.0
        %789 = vmatpush1.msra.mxu0 0.0
        %790 = vmatprep.subr.mxu0 0.0
        %791 = vmatpush1.msra.mxu0 0.0
        %792 = vmatprep.subr.mxu0 0.0
        %793 = vmatpush1.msra.mxu0 0.0
        %794 = vmatprep.subr.mxu0 0.0
        %795 = vmatpush1.msra.mxu0 0.0
        %796 = vmatprep.subr.mxu0 0.0
        %797 = vmatpush1.msra.mxu0 0.0
        %798 = vmatprep.subr.mxu0 0.0
        %799 = vmatpush1.msra.mxu0 0.0
        %800 = vmatprep.subr.mxu0 0.0
        %801 = vmatpush1.msra.mxu0 0.0
        %802 = vmatprep.subr.mxu0 0.0
        %803 = vmatpush1.msra.mxu0 0.0
        %804 = vmatprep.subr.mxu0 0.0
        %805 = vmatpush1.msra.mxu0 0.0
        %806 = vmatprep.subr.mxu0 0.0
        %807 = vmatpush1.msra.mxu0 0.0
        %808 = vmatprep.subr.mxu0 0.0
        %809 = vmatpush1.msra.mxu0 0.0
        %810 = vmatprep.subr.mxu0 0.0
        %811 = vmatpush1.msra.mxu0 0.0
        %812 = vmatprep.subr.mxu0 0.0
        %813 = vmatpush1.msra.mxu0 0.0
        %814 = vmatprep.subr.mxu0 0.0
        %815 = vmatpush1.msra.mxu0 0.0
        %816 = vmatprep.subr.mxu0 0.0
        %817 = vmatpush1.msra.mxu0 0.0
        %818 = vmatprep.subr.mxu0 0.0
        %819 = vmatpush1.msra.mxu0 0.0
        %820 = vmatprep.subr.mxu0 0.0
        %821 = vmatpush1.msra.mxu0 0.0
        %822 = vmatprep.subr.mxu0 0.0
        %823 = vmatpush1.msra.mxu0 0.0
        %824 = vmatprep.subr.mxu0 0.0
        %825 = vmatpush1.msra.mxu0 0.0
        %826 = vmatprep.mubr.f32.mxu0 0.0
        %827 = vmatmul.mubr.f32.gmra.mrb[0].mxu0 %v760
        %v828 = vpop.f32.mrb[0].mxu0
        %v829 = vadd.f32 0.0, %v828
        %v830 = vpop.f32.mrb[0].mxu0
        %831 = vdwg.mxu0
        %832 = vrot.lane.b32.xlu0 %v667, 120
        %v833 = vpop.permute.xlu0 %832
        %834 = vrot.lane.b32.xlu0 %v664, 120
        %v835 = vpop.permute.xlu0 %834
        %v836 = vsel %vm668, %v833, 0
        %v838 = vsel %vm668, %v835, 0
        %840 = vmatprep.subr.mxu0 0.0
        %841 = vmatpush1.xpose.msra.mxu0 %v838
        %842 = vmatprep.subr.mxu0 0.0
        %843 = vmatpush1.xpose.msra.mxu0 0.0
        %844 = vmatprep.subr.mxu0 0.0
        %845 = vmatpush1.xpose.msra.mxu0 0.0
        %846 = vmatprep.subr.mxu0 0.0
        %847 = vmatpush1.xpose.msra.mxu0 0.0
        %848 = vmatprep.subr.mxu0 0.0
        %849 = vmatpush1.xpose.msra.mxu0 0.0
        %850 = vmatprep.subr.mxu0 0.0
        %851 = vmatpush1.xpose.msra.mxu0 0.0
        %852 = vmatprep.subr.mxu0 0.0
        %853 = vmatpush1.xpose.msra.mxu0 0.0
        %854 = vmatprep.subr.mxu0 0.0
        %855 = vmatpush1.xpose.msra.mxu0 0.0
        %856 = vmatprep.subr.mxu0 0.0
        %857 = vmatpush1.xpose.msra.mxu0 0.0
        %858 = vmatprep.subr.mxu0 0.0
        %859 = vmatpush1.xpose.msra.mxu0 0.0
        %860 = vmatprep.subr.mxu0 0.0
        %861 = vmatpush1.xpose.msra.mxu0 0.0
        %862 = vmatprep.subr.mxu0 0.0
        %863 = vmatpush1.xpose.msra.mxu0 0.0
        %864 = vmatprep.subr.mxu0 0.0
        %865 = vmatpush1.xpose.msra.mxu0 0.0
        %866 = vmatprep.subr.mxu0 0.0
        %867 = vmatpush1.xpose.msra.mxu0 0.0
        %868 = vmatprep.subr.mxu0 0.0
        %869 = vmatpush1.xpose.msra.mxu0 0.0
        %870 = vmatprep.subr.mxu0 0.0
        %871 = vmatpush1.xpose.msra.mxu0 0.0
        %872 = vmatprep.subr.mxu0 0.0
        %873 = vmatpush1.xpose.msra.mxu0 0.0
        %874 = vmatprep.subr.mxu0 0.0
        %875 = vmatpush1.xpose.msra.mxu0 0.0
        %876 = vmatprep.subr.mxu0 0.0
        %877 = vmatpush1.xpose.msra.mxu0 0.0
        %878 = vmatprep.subr.mxu0 0.0
        %879 = vmatpush1.xpose.msra.mxu0 0.0
        %880 = vmatprep.subr.mxu0 0.0
        %881 = vmatpush1.xpose.msra.mxu0 0.0
        %882 = vmatprep.subr.mxu0 0.0
        %883 = vmatpush1.xpose.msra.mxu0 0.0
        %884 = vmatprep.subr.mxu0 0.0
        %885 = vmatpush1.xpose.msra.mxu0 0.0
        %886 = vmatprep.subr.mxu0 0.0
        %887 = vmatpush1.xpose.msra.mxu0 0.0
        %888 = vmatprep.subr.mxu0 0.0
        %889 = vmatpush1.xpose.msra.mxu0 0.0
        %890 = vmatprep.subr.mxu0 0.0
        %891 = vmatpush1.xpose.msra.mxu0 0.0
        %892 = vmatprep.subr.mxu0 0.0
        %893 = vmatpush1.xpose.msra.mxu0 0.0
        %894 = vmatprep.subr.mxu0 0.0
        %895 = vmatpush1.xpose.msra.mxu0 0.0
        %896 = vmatprep.subr.mxu0 0.0
        %897 = vmatpush1.xpose.msra.mxu0 0.0
        %898 = vmatprep.subr.mxu0 0.0
        %899 = vmatpush1.xpose.msra.mxu0 0.0
        %900 = vmatprep.subr.mxu0 0.0
        %901 = vmatpush1.xpose.msra.mxu0 0.0
        %902 = vmatprep.subr.mxu0 0.0
        %903 = vmatpush1.xpose.msra.mxu0 0.0
        %904 = vmatprep.mubr.f32.mxu0 0.0
        %905 = vmatmul.mubr.f32.gmra.mrb[0].mxu0 %v836
        %v906 = vpop.f32.mrb[0].mxu0
        %v907 = vadd.f32 0.0, %v906
        %v908 = vpop.f32.mrb[0].mxu0
        %909 = vdwg.mxu0
        %v910 = vsel %vm668, %v907, -inf
        %911 = vmax.xlane.f32.xlu0 %v910
        %v912 = vpop.xlane.xlu0 %911
        %v913 = vsub.f32 %v907, %v912
        %v914 = vmul.f32 %v913, 1.442695
        %v915 = vpow.pop %v914
        %v916 = vsel %vm668, %v915, 0.0
        %917 = vadd.xlane.f32.xlu0 %v916
        %v918 = vpop.xlane.xlu0 %917
        %v919 = vrcp.pop %v918
        %v920 = vmul.f32 %v915, %v919
        %921 = vrot.lane.b32.xlu0 %v664, 88
        %v922 = vpop.permute.xlu0 %921
        %v925 = vsel %vm668, %v920, 0
        %927 = vmatprep.subr.mxu0 0.0
        %928 = vmatpush1.msra.mxu0 %v922
        %929 = vmatprep.subr.mxu0 0.0
        %930 = vmatpush1.msra.mxu0 0.0
        %931 = vmatprep.subr.mxu0 0.0
        %932 = vmatpush1.msra.mxu0 0.0
        %933 = vmatprep.subr.mxu0 0.0
        %934 = vmatpush1.msra.mxu0 0.0
        %935 = vmatprep.subr.mxu0 0.0
        %936 = vmatpush1.msra.mxu0 0.0
        %937 = vmatprep.subr.mxu0 0.0
        %938 = vmatpush1.msra.mxu0 0.0
        %939 = vmatprep.subr.mxu0 0.0
        %940 = vmatpush1.msra.mxu0 0.0
        %941 = vmatprep.subr.mxu0 0.0
        %942 = vmatpush1.msra.mxu0 0.0
        %943 = vmatprep.subr.mxu0 0.0
        %944 = vmatpush1.msra.mxu0 0.0
        %945 = vmatprep.subr.mxu0 0.0
        %946 = vmatpush1.msra.mxu0 0.0
        %947 = vmatprep.subr.mxu0 0.0
        %948 = vmatpush1.msra.mxu0 0.0
        %949 = vmatprep.subr.mxu0 0.0
        %950 = vmatpush1.msra.mxu0 0.0
        %951 = vmatprep.subr.mxu0 0.0
        %952 = vmatpush1.msra.mxu0 0.0
        %953 = vmatprep.subr.mxu0 0.0
        %954 = vmatpush1.msra.mxu0 0.0
        %955 = vmatprep.subr.mxu0 0.0
        %956 = vmatpush1.msra.mxu0 0.0
        %957 = vmatprep.subr.mxu0 0.0
        %958 = vmatpush1.msra.mxu0 0.0
        %959 = vmatprep.subr.mxu0 0.0
        %960 = vmatpush1.msra.mxu0 0.0
        %961 = vmatprep.subr.mxu0 0.0
        %962 = vmatpush1.msra.mxu0 0.0
        %963 = vmatprep.subr.mxu0 0.0
        %964 = vmatpush1.msra.mxu0 0.0
        %965 = vmatprep.subr.mxu0 0.0
        %966 = vmatpush1.msra.mxu0 0.0
        %967 = vmatprep.subr.mxu0 0.0
        %968 = vmatpush1.msra.mxu0 0.0
        %969 = vmatprep.subr.mxu0 0.0
        %970 = vmatpush1.msra.mxu0 0.0
        %971 = vmatprep.subr.mxu0 0.0
        %972 = vmatpush1.msra.mxu0 0.0
        %973 = vmatprep.subr.mxu0 0.0
        %974 = vmatpush1.msra.mxu0 0.0
        %975 = vmatprep.subr.mxu0 0.0
        %976 = vmatpush1.msra.mxu0 0.0
        %977 = vmatprep.subr.mxu0 0.0
        %978 = vmatpush1.msra.mxu0 0.0
        %979 = vmatprep.subr.mxu0 0.0
        %980 = vmatpush1.msra.mxu0 0.0
        %981 = vmatprep.subr.mxu0 0.0
        %982 = vmatpush1.msra.mxu0 0.0
        %983 = vmatprep.subr.mxu0 0.0
        %984 = vmatpush1.msra.mxu0 0.0
        %985 = vmatprep.subr.mxu0 0.0
        %986 = vmatpush1.msra.mxu0 0.0
        %987 = vmatprep.subr.mxu0 0.0
        %988 = vmatpush1.msra.mxu0 0.0
        %989 = vmatprep.subr.mxu0 0.0
        %990 = vmatpush1.msra.mxu0 0.0
        %991 = vmatprep.mubr.f32.mxu0 0.0
        %992 = vmatmul.mubr.f32.gmra.mrb[0].mxu0 %v925
        %v993 = vpop.f32.mrb[0].mxu0
        %v994 = vadd.f32 0.0, %v993
        %v995 = vpop.f32.mrb[0].mxu0
        %996 = vdwg.mxu0
        %v998 = vsel %vm668, %v994, 0
        %1000 = vmatprep.subr.mxu0 0.0
        %1001 = vmatpush1.msra.mxu0 %v491
        %1002 = vmatprep.subr.mxu0 0.0
        %1003 = vmatpush1.msra.mxu0 0.0
        %1004 = vmatprep.subr.mxu0 0.0
        %1005 = vmatpush1.msra.mxu0 0.0
        %1006 = vmatprep.subr.mxu0 0.0
        %1007 = vmatpush1.msra.mxu0 0.0
        %1008 = vmatprep.subr.mxu0 0.0
        %1009 = vmatpush1.msra.mxu0 0.0
        %1010 = vmatprep.subr.mxu0 0.0
        %1011 = vmatpush1.msra.mxu0 0.0
        %1012 = vmatprep.subr.mxu0 0.0
        %1013 = vmatpush1.msra.mxu0 0.0
        %1014 = vmatprep.subr.mxu0 0.0
        %1015 = vmatpush1.msra.mxu0 0.0
        %1016 = vmatprep.subr.mxu0 0.0
        %1017 = vmatpush1.msra.mxu0 0.0
        %1018 = vmatprep.subr.mxu0 0.0
        %1019 = vmatpush1.msra.mxu0 0.0
        %1020 = vmatprep.subr.mxu0 0.0
        %1021 = vmatpush1.msra.mxu0 0.0
        %1022 = vmatprep.subr.mxu0 0.0
        %1023 = vmatpush1.msra.mxu0 0.0
        %1024 = vmatprep.subr.mxu0 0.0
        %1025 = vmatpush1.msra.mxu0 0.0
        %1026 = vmatprep.subr.mxu0 0.0
        %1027 = vmatpush1.msra.mxu0 0.0
        %1028 = vmatprep.subr.mxu0 0.0
        %1029 = vmatpush1.msra.mxu0 0.0
        %1030 = vmatprep.subr.mxu0 0.0
        %1031 = vmatpush1.msra.mxu0 0.0
        %1032 = vmatprep.subr.mxu0 0.0
        %1033 = vmatpush1.msra.mxu0 0.0
        %1034 = vmatprep.subr.mxu0 0.0
        %1035 = vmatpush1.msra.mxu0 0.0
        %1036 = vmatprep.subr.mxu0 0.0
        %1037 = vmatpush1.msra.mxu0 0.0
        %1038 = vmatprep.subr.mxu0 0.0
        %1039 = vmatpush1.msra.mxu0 0.0
        %1040 = vmatprep.subr.mxu0 0.0
        %1041 = vmatpush1.msra.mxu0 0.0
        %1042 = vmatprep.subr.mxu0 0.0
        %1043 = vmatpush1.msra.mxu0 0.0
        %1044 = vmatprep.subr.mxu0 0.0
        %1045 = vmatpush1.msra.mxu0 0.0
        %1046 = vmatprep.subr.mxu0 0.0
        %1047 = vmatpush1.msra.mxu0 0.0
        %1048 = vmatprep.subr.mxu0 0.0
        %1049 = vmatpush1.msra.mxu0 0.0
        %1050 = vmatprep.subr.mxu0 0.0
        %1051 = vmatpush1.msra.mxu0 0.0
        %1052 = vmatprep.subr.mxu0 0.0
        %1053 = vmatpush1.msra.mxu0 0.0
        %1054 = vmatprep.subr.mxu0 0.0
        %1055 = vmatpush1.msra.mxu0 0.0
        %1056 = vmatprep.subr.mxu0 0.0
        %1057 = vmatpush1.msra.mxu0 0.0
        %1058 = vmatprep.subr.mxu0 0.0
        %1059 = vmatpush1.msra.mxu0 0.0
        %1060 = vmatprep.subr.mxu0 0.0
        %1061 = vmatpush1.msra.mxu0 0.0
        %1062 = vmatprep.subr.mxu0 0.0
        %1063 = vmatpush1.msra.mxu0 0.0
        %1064 = vmatprep.mubr.f32.mxu0 0.0
        %1065 = vmatmul.mubr.f32.gmra.mrb[0].mxu0 %v998
        %v1066 = vpop.f32.mrb[0].mxu0
        %v1067 = vadd.f32 0.0, %v1066
        %v1068 = vpop.f32.mrb[0].mxu0
        %1069 = vdwg.mxu0
        %v1071 = vsel %vm668, %v829, 0
        %1073 = vmatprep.subr.mxu0 0.0
        %1074 = vmatpush1.msra.mxu0 %v490
        %1075 = vmatprep.subr.mxu0 0.0
        %1076 = vmatpush1.msra.mxu0 0.0
        %1077 = vmatprep.subr.mxu0 0.0
        %1078 = vmatpush1.msra.mxu0 0.0
        %1079 = vmatprep.subr.mxu0 0.0
        %1080 = vmatpush1.msra.mxu0 0.0
        %1081 = vmatprep.subr.mxu0 0.0
        %1082 = vmatpush1.msra.mxu0 0.0
        %1083 = vmatprep.subr.mxu0 0.0
        %1084 = vmatpush1.msra.mxu0 0.0
        %1085 = vmatprep.subr.mxu0 0.0
        %1086 = vmatpush1.msra.mxu0 0.0
        %1087 = vmatprep.subr.mxu0 0.0
        %1088 = vmatpush1.msra.mxu0 0.0
        %1089 = vmatprep.subr.mxu0 0.0
        %1090 = vmatpush1.msra.mxu0 0.0
        %1091 = vmatprep.subr.mxu0 0.0
        %1092 = vmatpush1.msra.mxu0 0.0
        %1093 = vmatprep.subr.mxu0 0.0
        %1094 = vmatpush1.msra.mxu0 0.0
        %1095 = vmatprep.subr.mxu0 0.0
        %1096 = vmatpush1.msra.mxu0 0.0
        %1097 = vmatprep.subr.mxu0 0.0
        %1098 = vmatpush1.msra.mxu0 0.0
        %1099 = vmatprep.subr.mxu0 0.0
        %1100 = vmatpush1.msra.mxu0 0.0
        %1101 = vmatprep.subr.mxu0 0.0
        %1102 = vmatpush1.msra.mxu0 0.0
        %1103 = vmatprep.subr.mxu0 0.0
        %1104 = vmatpush1.msra.mxu0 0.0
        %1105 = vmatprep.subr.mxu0 0.0
        %1106 = vmatpush1.msra.mxu0 0.0
        %1107 = vmatprep.subr.mxu0 0.0
        %1108 = vmatpush1.msra.mxu0 0.0
        %1109 = vmatprep.subr.mxu0 0.0
        %1110 = vmatpush1.msra.mxu0 0.0
        %1111 = vmatprep.subr.mxu0 0.0
        %1112 = vmatpush1.msra.mxu0 0.0
        %1113 = vmatprep.subr.mxu0 0.0
        %1114 = vmatpush1.msra.mxu0 0.0
        %1115 = vmatprep.subr.mxu0 0.0
        %1116 = vmatpush1.msra.mxu0 0.0
        %1117 = vmatprep.subr.mxu0 0.0
        %1118 = vmatpush1.msra.mxu0 0.0
        %1119 = vmatprep.subr.mxu0 0.0
        %1120 = vmatpush1.msra.mxu0 0.0
        %1121 = vmatprep.subr.mxu0 0.0
        %1122 = vmatpush1.msra.mxu0 0.0
        %1123 = vmatprep.subr.mxu0 0.0
        %1124 = vmatpush1.msra.mxu0 0.0
        %1125 = vmatprep.subr.mxu0 0.0
        %1126 = vmatpush1.msra.mxu0 0.0
        %1127 = vmatprep.subr.mxu0 0.0
        %1128 = vmatpush1.msra.mxu0 0.0
        %1129 = vmatprep.subr.mxu0 0.0
        %1130 = vmatpush1.msra.mxu0 0.0
        %1131 = vmatprep.subr.mxu0 0.0
        %1132 = vmatpush1.msra.mxu0 0.0
        %1133 = vmatprep.subr.mxu0 0.0
        %1134 = vmatpush1.msra.mxu0 0.0
        %1135 = vmatprep.subr.mxu0 0.0
        %1136 = vmatpush1.msra.mxu0 0.0
        %1137 = vmatprep.mubr.f32.mxu0 0.0
        %1138 = vmatmul.mubr.f32.gmra.mrb[0].mxu0 %v1071
        %v1139 = vpop.f32.mrb[0].mxu0
        %v1140 = vadd.f32 %v1067, %v1139
        %v1141 = vpop.f32.mrb[0].mxu0
        %1142 = vdwg.mxu0
        %1143 = vrot.lane.b32.xlu0 %v667, 112
        %v1144 = vpop.permute.xlu0 %1143
        %1145 = vrot.lane.b32.xlu0 %v664, 112
        %v1146 = vpop.permute.xlu0 %1145
        %v1147 = vsel %vm668, %v1144, 0
        %v1149 = vsel %vm668, %v1146, 0
        %1151 = vmatprep.subr.mxu0 0.0
        %1152 = vmatpush1.xpose.msra.mxu0 %v1149
        %1153 = vmatprep.subr.mxu0 0.0
        %1154 = vmatpush1.xpose.msra.mxu0 0.0
        %1155 = vmatprep.subr.mxu0 0.0
        %1156 = vmatpush1.xpose.msra.mxu0 0.0
        %1157 = vmatprep.subr.mxu0 0.0
        %1158 = vmatpush1.xpose.msra.mxu0 0.0
        %1159 = vmatprep.subr.mxu0 0.0
        %1160 = vmatpush1.xpose.msra.mxu0 0.0
        %1161 = vmatprep.subr.mxu0 0.0
        %1162 = vmatpush1.xpose.msra.mxu0 0.0
        %1163 = vmatprep.subr.mxu0 0.0
        %1164 = vmatpush1.xpose.msra.mxu0 0.0
        %1165 = vmatprep.subr.mxu0 0.0
        %1166 = vmatpush1.xpose.msra.mxu0 0.0
        %1167 = vmatprep.subr.mxu0 0.0
        %1168 = vmatpush1.xpose.msra.mxu0 0.0
        %1169 = vmatprep.subr.mxu0 0.0
        %1170 = vmatpush1.xpose.msra.mxu0 0.0
        %1171 = vmatprep.subr.mxu0 0.0
        %1172 = vmatpush1.xpose.msra.mxu0 0.0
        %1173 = vmatprep.subr.mxu0 0.0
        %1174 = vmatpush1.xpose.msra.mxu0 0.0
        %1175 = vmatprep.subr.mxu0 0.0
        %1176 = vmatpush1.xpose.msra.mxu0 0.0
        %1177 = vmatprep.subr.mxu0 0.0
        %1178 = vmatpush1.xpose.msra.mxu0 0.0
        %1179 = vmatprep.subr.mxu0 0.0
        %1180 = vmatpush1.xpose.msra.mxu0 0.0
        %1181 = vmatprep.subr.mxu0 0.0
        %1182 = vmatpush1.xpose.msra.mxu0 0.0
        %1183 = vmatprep.subr.mxu0 0.0
        %1184 = vmatpush1.xpose.msra.mxu0 0.0
        %1185 = vmatprep.subr.mxu0 0.0
        %1186 = vmatpush1.xpose.msra.mxu0 0.0
        %1187 = vmatprep.subr.mxu0 0.0
        %1188 = vmatpush1.xpose.msra.mxu0 0.0
        %1189 = vmatprep.subr.mxu0 0.0
        %1190 = vmatpush1.xpose.msra.mxu0 0.0
        %1191 = vmatprep.subr.mxu0 0.0
        %1192 = vmatpush1.xpose.msra.mxu0 0.0
        %1193 = vmatprep.subr.mxu0 0.0
        %1194 = vmatpush1.xpose.msra.mxu0 0.0
        %1195 = vmatprep.subr.mxu0 0.0
        %1196 = vmatpush1.xpose.msra.mxu0 0.0
        %1197 = vmatprep.subr.mxu0 0.0
        %1198 = vmatpush1.xpose.msra.mxu0 0.0
        %1199 = vmatprep.subr.mxu0 0.0
        %1200 = vmatpush1.xpose.msra.mxu0 0.0
        %1201 = vmatprep.subr.mxu0 0.0
        %1202 = vmatpush1.xpose.msra.mxu0 0.0
        %1203 = vmatprep.subr.mxu0 0.0
        %1204 = vmatpush1.xpose.msra.mxu0 0.0
        %1205 = vmatprep.subr.mxu0 0.0
        %1206 = vmatpush1.xpose.msra.mxu0 0.0
        %1207 = vmatprep.subr.mxu0 0.0
        %1208 = vmatpush1.xpose.msra.mxu0 0.0
        %1209 = vmatprep.subr.mxu0 0.0
        %1210 = vmatpush1.xpose.msra.mxu0 0.0
        %1211 = vmatprep.subr.mxu0 0.0
        %1212 = vmatpush1.xpose.msra.mxu0 0.0
        %1213 = vmatprep.subr.mxu0 0.0
        %1214 = vmatpush1.xpose.msra.mxu0 0.0
        %1215 = vmatprep.mubr.f32.mxu0 0.0
        %1216 = vmatmul.mubr.f32.gmra.mrb[0].mxu0 %v1147
        %v1217 = vpop.f32.mrb[0].mxu0
        %v1218 = vadd.f32 0.0, %v1217
        %v1219 = vpop.f32.mrb[0].mxu0
        %1220 = vdwg.mxu0
        %v1221 = vsel %vm668, %v1218, -inf
        %1222 = vmax.xlane.f32.xlu0 %v1221
        %v1223 = vpop.xlane.xlu0 %1222
        %v1224 = vsub.f32 %v1218, %v1223
        %v1225 = vmul.f32 %v1224, 1.442695
        %v1226 = vpow.pop %v1225
        %v1227 = vsel %vm668, %v1226, 0.0
        %1228 = vadd.xlane.f32.xlu0 %v1227
        %v1229 = vpop.xlane.xlu0 %1228
        %v1230 = vrcp.pop %v1229
        %v1231 = vmul.f32 %v1226, %v1230
        %1232 = vrot.lane.b32.xlu0 %v664, 80
        %v1233 = vpop.permute.xlu0 %1232
        %v1236 = vsel %vm668, %v1231, 0
        %1238 = vmatprep.subr.mxu0 0.0
        %1239 = vmatpush1.msra.mxu0 %v1233
        %1240 = vmatprep.subr.mxu0 0.0
        %1241 = vmatpush1.msra.mxu0 0.0
        %1242 = vmatprep.subr.mxu0 0.0
        %1243 = vmatpush1.msra.mxu0 0.0
        %1244 = vmatprep.subr.mxu0 0.0
        %1245 = vmatpush1.msra.mxu0 0.0
        %1246 = vmatprep.subr.mxu0 0.0
        %1247 = vmatpush1.msra.mxu0 0.0
        %1248 = vmatprep.subr.mxu0 0.0
        %1249 = vmatpush1.msra.mxu0 0.0
        %1250 = vmatprep.subr.mxu0 0.0
        %1251 = vmatpush1.msra.mxu0 0.0
        %1252 = vmatprep.subr.mxu0 0.0
        %1253 = vmatpush1.msra.mxu0 0.0
        %1254 = vmatprep.subr.mxu0 0.0
        %1255 = vmatpush1.msra.mxu0 0.0
        %1256 = vmatprep.subr.mxu0 0.0
        %1257 = vmatpush1.msra.mxu0 0.0
        %1258 = vmatprep.subr.mxu0 0.0
        %1259 = vmatpush1.msra.mxu0 0.0
        %1260 = vmatprep.subr.mxu0 0.0
        %1261 = vmatpush1.msra.mxu0 0.0
        %1262 = vmatprep.subr.mxu0 0.0
        %1263 = vmatpush1.msra.mxu0 0.0
        %1264 = vmatprep.subr.mxu0 0.0
        %1265 = vmatpush1.msra.mxu0 0.0
        %1266 = vmatprep.subr.mxu0 0.0
        %1267 = vmatpush1.msra.mxu0 0.0
        %1268 = vmatprep.subr.mxu0 0.0
        %1269 = vmatpush1.msra.mxu0 0.0
        %1270 = vmatprep.subr.mxu0 0.0
        %1271 = vmatpush1.msra.mxu0 0.0
        %1272 = vmatprep.subr.mxu0 0.0
        %1273 = vmatpush1.msra.mxu0 0.0
        %1274 = vmatprep.subr.mxu0 0.0
        %1275 = vmatpush1.msra.mxu0 0.0
        %1276 = vmatprep.subr.mxu0 0.0
        %1277 = vmatpush1.msra.mxu0 0.0
        %1278 = vmatprep.subr.mxu0 0.0
        %1279 = vmatpush1.msra.mxu0 0.0
        %1280 = vmatprep.subr.mxu0 0.0
        %1281 = vmatpush1.msra.mxu0 0.0
        %1282 = vmatprep.subr.mxu0 0.0
        %1283 = vmatpush1.msra.mxu0 0.0
        %1284 = vmatprep.subr.mxu0 0.0
        %1285 = vmatpush1.msra.mxu0 0.0
        %1286 = vmatprep.subr.mxu0 0.0
        %1287 = vmatpush1.msra.mxu0 0.0
        %1288 = vmatprep.subr.mxu0 0.0
        %1289 = vmatpush1.msra.mxu0 0.0
        %1290 = vmatprep.subr.mxu0 0.0
        %1291 = vmatpush1.msra.mxu0 0.0
        %1292 = vmatprep.subr.mxu0 0.0
        %1293 = vmatpush1.msra.mxu0 0.0
        %1294 = vmatprep.subr.mxu0 0.0
        %1295 = vmatpush1.msra.mxu0 0.0
        %1296 = vmatprep.subr.mxu0 0.0
        %1297 = vmatpush1.msra.mxu0 0.0
        %1298 = vmatprep.subr.mxu0 0.0
        %1299 = vmatpush1.msra.mxu0 0.0
        %1300 = vmatprep.subr.mxu0 0.0
        %1301 = vmatpush1.msra.mxu0 0.0
        %1302 = vmatprep.mubr.f32.mxu0 0.0
        %1303 = vmatmul.mubr.f32.gmra.mrb[0].mxu0 %v1236
        %v1304 = vpop.f32.mrb[0].mxu0
        %v1305 = vadd.f32 0.0, %v1304
        %v1306 = vpop.f32.mrb[0].mxu0
        %1307 = vdwg.mxu0
        %v1309 = vsel %vm668, %v1305, 0
        %1311 = vmatprep.subr.mxu0 0.0
        %1312 = vmatpush1.msra.mxu0 %v492
        %1313 = vmatprep.subr.mxu0 0.0
        %1314 = vmatpush1.msra.mxu0 0.0
        %1315 = vmatprep.subr.mxu0 0.0
        %1316 = vmatpush1.msra.mxu0 0.0
        %1317 = vmatprep.subr.mxu0 0.0
        %1318 = vmatpush1.msra.mxu0 0.0
        %1319 = vmatprep.subr.mxu0 0.0
        %1320 = vmatpush1.msra.mxu0 0.0
        %1321 = vmatprep.subr.mxu0 0.0
        %1322 = vmatpush1.msra.mxu0 0.0
        %1323 = vmatprep.subr.mxu0 0.0
        %1324 = vmatpush1.msra.mxu0 0.0
        %1325 = vmatprep.subr.mxu0 0.0
        %1326 = vmatpush1.msra.mxu0 0.0
        %1327 = vmatprep.subr.mxu0 0.0
        %1328 = vmatpush1.msra.mxu0 0.0
        %1329 = vmatprep.subr.mxu0 0.0
        %1330 = vmatpush1.msra.mxu0 0.0
        %1331 = vmatprep.subr.mxu0 0.0
        %1332 = vmatpush1.msra.mxu0 0.0
        %1333 = vmatprep.subr.mxu0 0.0
        %1334 = vmatpush1.msra.mxu0 0.0
        %1335 = vmatprep.subr.mxu0 0.0
        %1336 = vmatpush1.msra.mxu0 0.0
        %1337 = vmatprep.subr.mxu0 0.0
        %1338 = vmatpush1.msra.mxu0 0.0
        %1339 = vmatprep.subr.mxu0 0.0
        %1340 = vmatpush1.msra.mxu0 0.0
        %1341 = vmatprep.subr.mxu0 0.0
        %1342 = vmatpush1.msra.mxu0 0.0
        %1343 = vmatprep.subr.mxu0 0.0
        %1344 = vmatpush1.msra.mxu0 0.0
        %1345 = vmatprep.subr.mxu0 0.0
        %1346 = vmatpush1.msra.mxu0 0.0
        %1347 = vmatprep.subr.mxu0 0.0
        %1348 = vmatpush1.msra.mxu0 0.0
        %1349 = vmatprep.subr.mxu0 0.0
        %1350 = vmatpush1.msra.mxu0 0.0
        %1351 = vmatprep.subr.mxu0 0.0
        %1352 = vmatpush1.msra.mxu0 0.0
        %1353 = vmatprep.subr.mxu0 0.0
        %1354 = vmatpush1.msra.mxu0 0.0
        %1355 = vmatprep.subr.mxu0 0.0
        %1356 = vmatpush1.msra.mxu0 0.0
        %1357 = vmatprep.subr.mxu0 0.0
        %1358 = vmatpush1.msra.mxu0 0.0
        %1359 = vmatprep.subr.mxu0 0.0
        %1360 = vmatpush1.msra.mxu0 0.0
        %1361 = vmatprep.subr.mxu0 0.0
        %1362 = vmatpush1.msra.mxu0 0.0
        %1363 = vmatprep.subr.mxu0 0.0
        %1364 = vmatpush1.msra.mxu0 0.0
        %1365 = vmatprep.subr.mxu0 0.0
        %1366 = vmatpush1.msra.mxu0 0.0
        %1367 = vmatprep.subr.mxu0 0.0
        %1368 = vmatpush1.msra.mxu0 0.0
        %1369 = vmatprep.subr.mxu0 0.0
        %1370 = vmatpush1.msra.mxu0 0.0
        %1371 = vmatprep.subr.mxu0 0.0
        %1372 = vmatpush1.msra.mxu0 0.0
        %1373 = vmatprep.subr.mxu0 0.0
        %1374 = vmatpush1.msra.mxu0 0.0
        %1375 = vmatprep.mubr.f32.mxu0 0.0
        %1376 = vmatmul.mubr.f32.gmra.mrb[0].mxu0 %v1309
        %v1377 = vpop.f32.mrb[0].mxu0
        %v1378 = vadd.f32 0.0, %v1377
        %v1379 = vpop.f32.mrb[0].mxu0
        %1380 = vdwg.mxu0
        %v1381 = vadd.f32 %v1140, %v1378
        %1382 = vrot.lane.b32.xlu0 %v667, 104
        %v1383 = vpop.permute.xlu0 %1382
        %1384 = vrot.lane.b32.xlu0 %v664, 104
        %v1385 = vpop.permute.xlu0 %1384
        %v1386 = vsel %vm668, %v1383, 0
        %v1388 = vsel %vm668, %v1385, 0
        %1390 = vmatprep.subr.mxu0 0.0
        %1391 = vmatpush1.xpose.msra.mxu0 %v1388
        %1392 = vmatprep.subr.mxu0 0.0
        %1393 = vmatpush1.xpose.msra.mxu0 0.0
        %1394 = vmatprep.subr.mxu0 0.0
        %1395 = vmatpush1.xpose.msra.mxu0 0.0
        %1396 = vmatprep.subr.mxu0 0.0
        %1397 = vmatpush1.xpose.msra.mxu0 0.0
        %1398 = vmatprep.subr.mxu0 0.0
        %1399 = vmatpush1.xpose.msra.mxu0 0.0
        %1400 = vmatprep.subr.mxu0 0.0
        %1401 = vmatpush1.xpose.msra.mxu0 0.0
        %1402 = vmatprep.subr.mxu0 0.0
        %1403 = vmatpush1.xpose.msra.mxu0 0.0
        %1404 = vmatprep.subr.mxu0 0.0
        %1405 = vmatpush1.xpose.msra.mxu0 0.0
        %1406 = vmatprep.subr.mxu0 0.0
        %1407 = vmatpush1.xpose.msra.mxu0 0.0
        %1408 = vmatprep.subr.mxu0 0.0
        %1409 = vmatpush1.xpose.msra.mxu0 0.0
        %1410 = vmatprep.subr.mxu0 0.0
        %1411 = vmatpush1.xpose.msra.mxu0 0.0
        %1412 = vmatprep.subr.mxu0 0.0
        %1413 = vmatpush1.xpose.msra.mxu0 0.0
        %1414 = vmatprep.subr.mxu0 0.0
        %1415 = vmatpush1.xpose.msra.mxu0 0.0
        %1416 = vmatprep.subr.mxu0 0.0
        %1417 = vmatpush1.xpose.msra.mxu0 0.0
        %1418 = vmatprep.subr.mxu0 0.0
        %1419 = vmatpush1.xpose.msra.mxu0 0.0
        %1420 = vmatprep.subr.mxu0 0.0
        %1421 = vmatpush1.xpose.msra.mxu0 0.0
        %1422 = vmatprep.subr.mxu0 0.0
        %1423 = vmatpush1.xpose.msra.mxu0 0.0
        %1424 = vmatprep.subr.mxu0 0.0
        %1425 = vmatpush1.xpose.msra.mxu0 0.0
        %1426 = vmatprep.subr.mxu0 0.0
        %1427 = vmatpush1.xpose.msra.mxu0 0.0
        %1428 = vmatprep.subr.mxu0 0.0
        %1429 = vmatpush1.xpose.msra.mxu0 0.0
        %1430 = vmatprep.subr.mxu0 0.0
        %1431 = vmatpush1.xpose.msra.mxu0 0.0
        %1432 = vmatprep.subr.mxu0 0.0
        %1433 = vmatpush1.xpose.msra.mxu0 0.0
        %1434 = vmatprep.subr.mxu0 0.0
        %1435 = vmatpush1.xpose.msra.mxu0 0.0
        %1436 = vmatprep.subr.mxu0 0.0
        %1437 = vmatpush1.xpose.msra.mxu0 0.0
        %1438 = vmatprep.subr.mxu0 0.0
        %1439 = vmatpush1.xpose.msra.mxu0 0.0
        %1440 = vmatprep.subr.mxu0 0.0
        %1441 = vmatpush1.xpose.msra.mxu0 0.0
        %1442 = vmatprep.subr.mxu0 0.0
        %1443 = vmatpush1.xpose.msra.mxu0 0.0
        %1444 = vmatprep.subr.mxu0 0.0
        %1445 = vmatpush1.xpose.msra.mxu0 0.0
        %1446 = vmatprep.subr.mxu0 0.0
        %1447 = vmatpush1.xpose.msra.mxu0 0.0
        %1448 = vmatprep.subr.mxu0 0.0
        %1449 = vmatpush1.xpose.msra.mxu0 0.0
        %1450 = vmatprep.subr.mxu0 0.0
        %1451 = vmatpush1.xpose.msra.mxu0 0.0
        %1452 = vmatprep.subr.mxu0 0.0
        %1453 = vmatpush1.xpose.msra.mxu0 0.0
        %1454 = vmatprep.mubr.f32.mxu0 0.0
        %1455 = vmatmul.mubr.f32.gmra.mrb[0].mxu0 %v1386
        %v1456 = vpop.f32.mrb[0].mxu0
        %v1457 = vadd.f32 0.0, %v1456
        %v1458 = vpop.f32.mrb[0].mxu0
        %1459 = vdwg.mxu0
        %v1460 = vsel %vm668, %v1457, -inf
        %1461 = vmax.xlane.f32.xlu0 %v1460
        %v1462 = vpop.xlane.xlu0 %1461
        %v1463 = vsub.f32 %v1457, %v1462
        %v1464 = vmul.f32 %v1463, 1.442695
        %v1465 = vpow.pop %v1464
        %v1466 = vsel %vm668, %v1465, 0.0
        %1467 = vadd.xlane.f32.xlu0 %v1466
        %v1468 = vpop.xlane.xlu0 %1467
        %v1469 = vrcp.pop %v1468
        %v1470 = vmul.f32 %v1465, %v1469
        %1471 = vrot.lane.b32.xlu0 %v664, 72
        %v1472 = vpop.permute.xlu0 %1471
        %v1475 = vsel %vm668, %v1470, 0
        %1477 = vmatprep.subr.mxu0 0.0
        %1478 = vmatpush1.msra.mxu0 %v1472
        %1479 = vmatprep.subr.mxu0 0.0
        %1480 = vmatpush1.msra.mxu0 0.0
        %1481 = vmatprep.subr.mxu0 0.0
        %1482 = vmatpush1.msra.mxu0 0.0
        %1483 = vmatprep.subr.mxu0 0.0
        %1484 = vmatpush1.msra.mxu0 0.0
        %1485 = vmatprep.subr.mxu0 0.0
        %1486 = vmatpush1.msra.mxu0 0.0
        %1487 = vmatprep.subr.mxu0 0.0
        %1488 = vmatpush1.msra.mxu0 0.0
        %1489 = vmatprep.subr.mxu0 0.0
        %1490 = vmatpush1.msra.mxu0 0.0
        %1491 = vmatprep.subr.mxu0 0.0
        %1492 = vmatpush1.msra.mxu0 0.0
        %1493 = vmatprep.subr.mxu0 0.0
        %1494 = vmatpush1.msra.mxu0 0.0
        %1495 = vmatprep.subr.mxu0 0.0
        %1496 = vmatpush1.msra.mxu0 0.0
        %1497 = vmatprep.subr.mxu0 0.0
        %1498 = vmatpush1.msra.mxu0 0.0
        %1499 = vmatprep.subr.mxu0 0.0
        %1500 = vmatpush1.msra.mxu0 0.0
        %1501 = vmatprep.subr.mxu0 0.0
        %1502 = vmatpush1.msra.mxu0 0.0
        %1503 = vmatprep.subr.mxu0 0.0
        %1504 = vmatpush1.msra.mxu0 0.0
        %1505 = vmatprep.subr.mxu0 0.0
        %1506 = vmatpush1.msra.mxu0 0.0
        %1507 = vmatprep.subr.mxu0 0.0
        %1508 = vmatpush1.msra.mxu0 0.0
        %1509 = vmatprep.subr.mxu0 0.0
        %1510 = vmatpush1.msra.mxu0 0.0
        %1511 = vmatprep.subr.mxu0 0.0
        %1512 = vmatpush1.msra.mxu0 0.0
        %1513 = vmatprep.subr.mxu0 0.0
        %1514 = vmatpush1.msra.mxu0 0.0
        %1515 = vmatprep.subr.mxu0 0.0
        %1516 = vmatpush1.msra.mxu0 0.0
        %1517 = vmatprep.subr.mxu0 0.0
        %1518 = vmatpush1.msra.mxu0 0.0
        %1519 = vmatprep.subr.mxu0 0.0
        %1520 = vmatpush1.msra.mxu0 0.0
        %1521 = vmatprep.subr.mxu0 0.0
        %1522 = vmatpush1.msra.mxu0 0.0
        %1523 = vmatprep.subr.mxu0 0.0
        %1524 = vmatpush1.msra.mxu0 0.0
        %1525 = vmatprep.subr.mxu0 0.0
        %1526 = vmatpush1.msra.mxu0 0.0
        %1527 = vmatprep.subr.mxu0 0.0
        %1528 = vmatpush1.msra.mxu0 0.0
        %1529 = vmatprep.subr.mxu0 0.0
        %1530 = vmatpush1.msra.mxu0 0.0
        %1531 = vmatprep.subr.mxu0 0.0
        %1532 = vmatpush1.msra.mxu0 0.0
        %1533 = vmatprep.subr.mxu0 0.0
        %1534 = vmatpush1.msra.mxu0 0.0
        %1535 = vmatprep.subr.mxu0 0.0
        %1536 = vmatpush1.msra.mxu0 0.0
        %1537 = vmatprep.subr.mxu0 0.0
        %1538 = vmatpush1.msra.mxu0 0.0
        %1539 = vmatprep.subr.mxu0 0.0
        %1540 = vmatpush1.msra.mxu0 0.0
        %1541 = vmatprep.mubr.f32.mxu0 0.0
        %1542 = vmatmul.mubr.f32.gmra.mrb[0].mxu0 %v1475
        %v1543 = vpop.f32.mrb[0].mxu0
        %v1544 = vadd.f32 0.0, %v1543
        %v1545 = vpop.f32.mrb[0].mxu0
        %1546 = vdwg.mxu0
        %v1548 = vsel %vm668, %v1544, 0
        %1550 = vmatprep.subr.mxu0 0.0
        %1551 = vmatpush1.msra.mxu0 %v493
        %1552 = vmatprep.subr.mxu0 0.0
        %1553 = vmatpush1.msra.mxu0 0.0
        %1554 = vmatprep.subr.mxu0 0.0
        %1555 = vmatpush1.msra.mxu0 0.0
        %1556 = vmatprep.subr.mxu0 0.0
        %1557 = vmatpush1.msra.mxu0 0.0
        %1558 = vmatprep.subr.mxu0 0.0
        %1559 = vmatpush1.msra.mxu0 0.0
        %1560 = vmatprep.subr.mxu0 0.0
        %1561 = vmatpush1.msra.mxu0 0.0
        %1562 = vmatprep.subr.mxu0 0.0
        %1563 = vmatpush1.msra.mxu0 0.0
        %1564 = vmatprep.subr.mxu0 0.0
        %1565 = vmatpush1.msra.mxu0 0.0
        %1566 = vmatprep.subr.mxu0 0.0
        %1567 = vmatpush1.msra.mxu0 0.0
        %1568 = vmatprep.subr.mxu0 0.0
        %1569 = vmatpush1.msra.mxu0 0.0
        %1570 = vmatprep.subr.mxu0 0.0
        %1571 = vmatpush1.msra.mxu0 0.0
        %1572 = vmatprep.subr.mxu0 0.0
        %1573 = vmatpush1.msra.mxu0 0.0
        %1574 = vmatprep.subr.mxu0 0.0
        %1575 = vmatpush1.msra.mxu0 0.0
        %1576 = vmatprep.subr.mxu0 0.0
        %1577 = vmatpush1.msra.mxu0 0.0
        %1578 = vmatprep.subr.mxu0 0.0
        %1579 = vmatpush1.msra.mxu0 0.0
        %1580 = vmatprep.subr.mxu0 0.0
        %1581 = vmatpush1.msra.mxu0 0.0
        %1582 = vmatprep.subr.mxu0 0.0
        %1583 = vmatpush1.msra.mxu0 0.0
        %1584 = vmatprep.subr.mxu0 0.0
        %1585 = vmatpush1.msra.mxu0 0.0
        %1586 = vmatprep.subr.mxu0 0.0
        %1587 = vmatpush1.msra.mxu0 0.0
        %1588 = vmatprep.subr.mxu0 0.0
        %1589 = vmatpush1.msra.mxu0 0.0
        %1590 = vmatprep.subr.mxu0 0.0
        %1591 = vmatpush1.msra.mxu0 0.0
        %1592 = vmatprep.subr.mxu0 0.0
        %1593 = vmatpush1.msra.mxu0 0.0
        %1594 = vmatprep.subr.mxu0 0.0
        %1595 = vmatpush1.msra.mxu0 0.0
        %1596 = vmatprep.subr.mxu0 0.0
        %1597 = vmatpush1.msra.mxu0 0.0
        %1598 = vmatprep.subr.mxu0 0.0
        %1599 = vmatpush1.msra.mxu0 0.0
        %1600 = vmatprep.subr.mxu0 0.0
        %1601 = vmatpush1.msra.mxu0 0.0
        %1602 = vmatprep.subr.mxu0 0.0
        %1603 = vmatpush1.msra.mxu0 0.0
        %1604 = vmatprep.subr.mxu0 0.0
        %1605 = vmatpush1.msra.mxu0 0.0
        %1606 = vmatprep.subr.mxu0 0.0
        %1607 = vmatpush1.msra.mxu0 0.0
        %1608 = vmatprep.subr.mxu0 0.0
        %1609 = vmatpush1.msra.mxu0 0.0
        %1610 = vmatprep.subr.mxu0 0.0
        %1611 = vmatpush1.msra.mxu0 0.0
        %1612 = vmatprep.subr.mxu0 0.0
        %1613 = vmatpush1.msra.mxu0 0.0
        %1614 = vmatprep.mubr.f32.mxu0 0.0
        %1615 = vmatmul.mubr.f32.gmra.mrb[0].mxu0 %v1548
        %v1616 = vpop.f32.mrb[0].mxu0
        %v1617 = vadd.f32 0.0, %v1616
        %v1618 = vpop.f32.mrb[0].mxu0
        %1619 = vdwg.mxu0
        %v1620 = vadd.f32 %v1381, %v1617
        %v1621 = vlaneseq
        %v1622 = vshrl.u32 %v1621, 7
        %v1623 = vsub.s32 0, %v1622
        %v1624 = vrot.slane %v507, %v1623
        %v1625 = vadd.f32 %v1620, %v1624
        %v1626 = vadd.f32 %v479, %v1625
        %v1627 = vsel %vm514, %v1626, 0.0
        %1628 = vadd.xlane.f32.xlu0 %v1627
        %v1629 = vpop.xlane.xlu0 %1628
        %v1630 = vrcp.pop 32.0
        %v1631 = vmul.f32 %v1629, %v1630
        %v1632 = vsub.f32 %v1626, %v1631
        %v1633 = vmul.f32 %v1632, %v1632
        %v1634 = vsel %vm514, %v1633, 0.0
        %1635 = vadd.xlane.f32.xlu0 %v1634
        %v1636 = vpop.xlane.xlu0 %1635
        %v1637 = vmul.f32 %v1636, %v1630
        %v1638 = vadd.f32 %v1637, 1e-05
        %v1639 = vrsqrt.pop %v1638
        %v1640 = vmul.f32 %v1632, %v1639
        %v1641 = vlaneseq
        %v1642 = vshrl.u32 %v1641, 7
        %v1643 = vsub.s32 2, %v1642
        %v1644 = vrot.slane %v507, %v1643
        %v1645 = vmul.f32 %v1640, %v1644
        %v1646 = vlaneseq
        %v1647 = vshrl.u32 %v1646, 7
        %v1648 = vsub.s32 3, %v1647
        %v1649 = vrot.slane %v507, %v1648
        %v1650 = vadd.f32 %v1645, %v1649
        %v1652 = vlaneseq
        %v1653 = vshrl.u32 %v1652, 7
        %v1654 = vsub.s32 0, %v1653
        %v1655 = vrot.slane %v498, %v1654
        %v1658 = vsel %vm514, %v1650, 0
        %1660 = vmatprep.subr.mxu0 0.0
        %1661 = vmatpush1.msra.mxu0 %v494
        %1662 = vmatprep.subr.mxu0 0.0
        %1663 = vmatpush1.msra.mxu0 %v495
        %1664 = vmatprep.subr.mxu0 0.0
        %1665 = vmatpush1.msra.mxu0 %v496
        %1666 = vmatprep.subr.mxu0 0.0
        %1667 = vmatpush1.msra.mxu0 %v497
        %1668 = vmatprep.subr.mxu0 0.0
        %1669 = vmatpush1.msra.mxu0 0.0
        %1670 = vmatprep.subr.mxu0 0.0
        %1671 = vmatpush1.msra.mxu0 0.0
        %1672 = vmatprep.subr.mxu0 0.0
        %1673 = vmatpush1.msra.mxu0 0.0
        %1674 = vmatprep.subr.mxu0 0.0
        %1675 = vmatpush1.msra.mxu0 0.0
        %1676 = vmatprep.subr.mxu0 0.0
        %1677 = vmatpush1.msra.mxu0 0.0
        %1678 = vmatprep.subr.mxu0 0.0
        %1679 = vmatpush1.msra.mxu0 0.0
        %1680 = vmatprep.subr.mxu0 0.0
        %1681 = vmatpush1.msra.mxu0 0.0
        %1682 = vmatprep.subr.mxu0 0.0
        %1683 = vmatpush1.msra.mxu0 0.0
        %1684 = vmatprep.subr.mxu0 0.0
        %1685 = vmatpush1.msra.mxu0 0.0
        %1686 = vmatprep.subr.mxu0 0.0
        %1687 = vmatpush1.msra.mxu0 0.0
        %1688 = vmatprep.subr.mxu0 0.0
        %1689 = vmatpush1.msra.mxu0 0.0
        %1690 = vmatprep.subr.mxu0 0.0
        %1691 = vmatpush1.msra.mxu0 0.0
        %1692 = vmatprep.subr.mxu0 0.0
        %1693 = vmatpush1.msra.mxu0 0.0
        %1694 = vmatprep.subr.mxu0 0.0
        %1695 = vmatpush1.msra.mxu0 0.0
        %1696 = vmatprep.subr.mxu0 0.0
        %1697 = vmatpush1.msra.mxu0 0.0
        %1698 = vmatprep.subr.mxu0 0.0
        %1699 = vmatpush1.msra.mxu0 0.0
        %1700 = vmatprep.subr.mxu0 0.0
        %1701 = vmatpush1.msra.mxu0 0.0
        %1702 = vmatprep.subr.mxu0 0.0
        %1703 = vmatpush1.msra.mxu0 0.0
        %1704 = vmatprep.subr.mxu0 0.0
        %1705 = vmatpush1.msra.mxu0 0.0
        %1706 = vmatprep.subr.mxu0 0.0
        %1707 = vmatpush1.msra.mxu0 0.0
        %1708 = vmatprep.subr.mxu0 0.0
        %1709 = vmatpush1.msra.mxu0 0.0
        %1710 = vmatprep.subr.mxu0 0.0
        %1711 = vmatpush1.msra.mxu0 0.0
        %1712 = vmatprep.subr.mxu0 0.0
        %1713 = vmatpush1.msra.mxu0 0.0
        %1714 = vmatprep.subr.mxu0 0.0
        %1715 = vmatpush1.msra.mxu0 0.0
        %1716 = vmatprep.subr.mxu0 0.0
        %1717 = vmatpush1.msra.mxu0 0.0
        %1718 = vmatprep.subr.mxu0 0.0
        %1719 = vmatpush1.msra.mxu0 0.0
        %1720 = vmatprep.subr.mxu0 0.0
        %1721 = vmatpush1.msra.mxu0 0.0
        %1722 = vmatprep.subr.mxu0 0.0
        %1723 = vmatpush1.msra.mxu0 0.0
        %1724 = vmatprep.mubr.f32.mxu0 0.0
        %1725 = vmatmul.mubr.f32.gmra.mrb[0].mxu0 %v1658
        %v1726 = vpop.f32.mrb[0].mxu0
        %v1727 = vadd.f32 %v1655, %v1726
        %v1728 = vpop.f32.mrb[0].mxu0
        %1729 = vdwg.mxu0
        %v1730 = vmax.f32 %v1727, 0.0
        %v1731 = vlaneseq
        %v1732 = vshrl.u32 %v1731, 7
        %v1733 = vsub.s32 1, %v1732
        %v1734 = vrot.slane %v507, %v1733
        %vm1735 = vcmask 523264
        %v1737 = vsel %vm1735, %v1730, 0
        %1739 = vmatprep.subr.mxu0 0.0
        %1740 = vmatpush1.msra.mxu0 %v499
        %1741 = vmatprep.subr.mxu0 0.0
        %1742 = vmatpush1.msra.mxu0 %v500
        %1743 = vmatprep.subr.mxu0 0.0
        %1744 = vmatpush1.msra.mxu0 %v501
        %1745 = vmatprep.subr.mxu0 0.0
        %1746 = vmatpush1.msra.mxu0 %v502
        %1747 = vmatprep.subr.mxu0 0.0
        %1748 = vmatpush1.msra.mxu0 %v503
        %1749 = vmatprep.subr.mxu0 0.0
        %1750 = vmatpush1.msra.mxu0 %v504
        %1751 = vmatprep.subr.mxu0 0.0
        %1752 = vmatpush1.msra.mxu0 %v505
        %1753 = vmatprep.subr.mxu0 0.0
        %1754 = vmatpush1.msra.mxu0 %v506
        %1755 = vmatprep.subr.mxu0 0.0
        %1756 = vmatpush1.msra.mxu0 0.0
        %1757 = vmatprep.subr.mxu0 0.0
        %1758 = vmatpush1.msra.mxu0 0.0
        %1759 = vmatprep.subr.mxu0 0.0
        %1760 = vmatpush1.msra.mxu0 0.0
        %1761 = vmatprep.subr.mxu0 0.0
        %1762 = vmatpush1.msra.mxu0 0.0
        %1763 = vmatprep.subr.mxu0 0.0
        %1764 = vmatpush1.msra.mxu0 0.0
        %1765 = vmatprep.subr.mxu0 0.0
        %1766 = vmatpush1.msra.mxu0 0.0
        %1767 = vmatprep.subr.mxu0 0.0
        %1768 = vmatpush1.msra.mxu0 0.0
        %1769 = vmatprep.subr.mxu0 0.0
        %1770 = vmatpush1.msra.mxu0 0.0
        %1771 = vmatprep.subr.mxu0 0.0
        %1772 = vmatpush1.msra.mxu0 0.0
        %1773 = vmatprep.subr.mxu0 0.0
        %1774 = vmatpush1.msra.mxu0 0.0
        %1775 = vmatprep.subr.mxu0 0.0
        %1776 = vmatpush1.msra.mxu0 0.0
        %1777 = vmatprep.subr.mxu0 0.0
        %1778 = vmatpush1.msra.mxu0 0.0
        %1779 = vmatprep.subr.mxu0 0.0
        %1780 = vmatpush1.msra.mxu0 0.0
        %1781 = vmatprep.subr.mxu0 0.0
        %1782 = vmatpush1.msra.mxu0 0.0
        %1783 = vmatprep.subr.mxu0 0.0
        %1784 = vmatpush1.msra.mxu0 0.0
        %1785 = vmatprep.subr.mxu0 0.0
        %1786 = vmatpush1.msra.mxu0 0.0
        %1787 = vmatprep.subr.mxu0 0.0
        %1788 = vmatpush1.msra.mxu0 0.0
        %1789 = vmatprep.subr.mxu0 0.0
        %1790 = vmatpush1.msra.mxu0 0.0
        %1791 = vmatprep.subr.mxu0 0.0
        %1792 = vmatpush1.msra.mxu0 0.0
        %1793 = vmatprep.subr.mxu0 0.0
        %1794 = vmatpush1.msra.mxu0 0.0
        %1795 = vmatprep.subr.mxu0 0.0
        %1796 = vmatpush1.msra.mxu0 0.0
        %1797 = vmatprep.subr.mxu0 0.0
        %1798 = vmatpush1.msra.mxu0 0.0
        %1799 = vmatprep.subr.mxu0 0.0
        %1800 = vmatpush1.msra.mxu0 0.0
        %1801 = vmatprep.subr.mxu0 0.0
        %1802 = vmatpush1.msra.mxu0 0.0
        %1803 = vmatprep.mubr.f32.mxu0 0.0
        %1804 = vmatmul.mubr.f32.gmra.mrb[0].mxu0 %v1737
        %v1805 = vpop.f32.mrb[0].mxu0
        %v1806 = vadd.f32 %v1734, %v1805
        %v1807 = vpop.f32.mrb[0].mxu0
        %1808 = vdwg.mxu0
        %v1809 = vadd.f32 %v1650, %v1806
        %v1810 = vsel %vm514, %v1809, 0.0
        %1811 = vadd.xlane.f32.xlu0 %v1810
        %v1812 = vpop.xlane.xlu0 %1811
        %v1813 = vmul.f32 %v1812, %v1630
        %v1814 = vsub.f32 %v1809, %v1813
        %v1815 = vmul.f32 %v1814, %v1814
        %v1816 = vsel %vm514, %v1815, 0.0
        %1817 = vadd.xlane.f32.xlu0 %v1816
        %v1818 = vpop.xlane.xlu0 %1817
        %v1819 = vmul.f32 %v1818, %v1630
        %v1820 = vadd.f32 %v1819, 1e-05
        %v1821 = vrsqrt.pop %v1820
        %v1822 = vmul.f32 %v1814, %v1821
        %v1823 = vlaneseq
        %v1824 = vshrl.u32 %v1823, 7
        %v1825 = vsub.s32 4, %v1824
        %v1826 = vrot.slane %v507, %v1825
        %v1827 = vmul.f32 %v1822, %v1826
        %v1828 = vlaneseq
        %v1829 = vshrl.u32 %v1828, 7
        %v1830 = vsub.s32 5, %v1829
        %v1831 = vrot.slane %v507, %v1830
        %v1832 = vadd.f32 %v1827, %v1831
        %1833 = vst.msk [vmem:[%s477] sm:$0xff] %vm514, %v1832
        %s1834 = sand.u32 %s281, 1
        %s1835 = scalar_lea.sflag [#allocation4], %s1834
        %s1836 = sand.u32 %s281, 1
        %s1837 = smul.addr %s1836, 8
        %s1838 = scalar_lea.vmem [#allocation11], %s1837
        // Predicated region
        $region85: #{tpu_custom_call.1} parent=63 // pred_check
          %p1839 = pneg %p291
        $region86: #{tpu_custom_call.1} parent=63 // pred_check_branch
          %1841 = sbr.rel (%p1839) target = $region88
        $region87: #{tpu_custom_call.1} parent=63 // pred_region
          %s1843 = ssub.s32 128, 128
          %1844 = vsyncadd %s1835, %s1843
          %s1845 = smul.addr %s32, 128
          %s1846 = scalar_lea.hbm %s11, %s1845
          %s1848 = sshll.u32 %s1838, 4
          %s1849 = int_to_ptr.vmem [resolvable:$true] %s1848
          %1851 = dma.vmem_to_hbm [thread:$0]  %s1849, 128, %s1846, %s1835
        $region88: #{tpu_custom_call.1} parent=63 // pred_fallthru
          _
      $region64: #{tpu_custom_call.1} parent=5 // pred_fallthru
        _
      %p1852 = scmp.le.s32.totalorder 2, %s27
      // Predicated region
      $region89: #{tpu_custom_call.1} parent=5 // pred_check
        %p1853 = pneg %p1852
      $region90: #{tpu_custom_call.1} parent=5 // pred_check_branch
        %1855 = sbr.rel (%p1853) target = $region92
      $region91: #{tpu_custom_call.1} parent=5 // pred_region
        %s1856 = ssub.s32 %s27, 2
        // Predicated region
        $region93: #{tpu_custom_call.1} parent=91 // pred_check
          %p1857 = pneg %p297
        $region94: #{tpu_custom_call.1} parent=91 // pred_check_branch
          %1859 = sbr.rel (%p1857) target = $region96
        $region95: #{tpu_custom_call.1} parent=91 // pred_region
          %s1860 = sand.u32 %s282, 1
          %s1861 = scalar_lea.sflag [#allocation4], %s1860
          %s1862 = sand.u32 %s282, 1
          %s1863 = smul.addr %s1862, 8
          %s1864 = scalar_lea.vmem [#allocation11], %s1863
          %1865 = dma.done %s1861, 128
        $region96: #{tpu_custom_call.1} parent=91 // pred_fallthru
          _
      $region92: #{tpu_custom_call.1} parent=5 // pred_fallthru
        _
    $region6: #{tpu_custom_call.1} parent=1 // loop_footer
      %s31 = sadd.s32 1, %s27
    $region7: #{tpu_custom_call.1} parent=1 // loop_footer_branch
      %26 = sbr.rel target = $region3
    $region8: #{tpu_custom_call.1} parent=1 // loop_exit
      _
    %1866 = vsyncpa [#allocation3], 1
    %s1867 = scalar_lea.sflag [#allocation3], 1
    %1868 = vsyncpa %s1867, 1
    %1869 = vsyncpa [#allocation6], 1
    %s1870 = scalar_lea.sflag [#allocation6], 1
    %1871 = vsyncpa %s1870, 1
    %1872 = vsyncpa [#allocation9], 1
    %1873 = vsyncpa [#allocation4], 1
    %s1874 = scalar_lea.sflag [#allocation4], 1
    %1875 = vsyncpa %s1874, 1

</llo_original>
